<compile_context>
chip_gen: v7x
topology: tpu7x:2x2x1
jax: 0.10.0
libtpu: 0.0.40
codegen_flags: <defaults>
</compile_context>

<pallas_src>
import functools

import jax
import jax.numpy as jnp
from jax.experimental import pallas as pl
from jax.experimental.pallas import tpu as pltpu

# ----------------------------- model config (small) -----------------------------
VOCAB_SIZE = 50
VOCAB_PAD = 64           # one-hot / embedding rows padded to a lane-friendly size
EMBEDDING_DIM = 32
HIDDEN_DIM = 32          # 4H = 128 (one lane tile per layer), 8H = 256 fused gate width
N_LAYERS = 2
OUTPUT_SIZE = 1
BATCH = 2
SEQ = 8


# ------------------- packed f32 parameter-slab layout (one operand) -------------------
def _ru8(x):
    return (x + 7) // 8 * 8


_H, _E = HIDDEN_DIM, EMBEDDING_DIM
OFF_WIH0 = 0                          # rows [0, E)          : x -> fused-layout layer-0 gates
OFF_BIAS = _E                         # row  E               : fused-layout bias [b0 | b1]
OFF_WBIG = _ru8(OFF_BIAS + 1)         # rows [.., ..+2H)     : fused recurrent weight
OFF_FC = OFF_WBIG + 2 * _H            # row                  : fc weight (lanes 0:H), fc bias (lane H)
OFF_EMB = _ru8(OFF_FC + 1)            # rows [.., ..+VP)     : embedding table (lanes 0:E)
PARAM_ROWS = OFF_EMB + VOCAB_PAD      # = 176 rows x 256 lanes f32  (~176 KB, VMEM-resident)


# ----------------------------- fused forward kernel ------------------------------
def fused_sentiment_lstm_kernel(ids_ref, slab_ref, state_ref, out_ref, *, T, B, H, E, VP):
    """Whole SentimentLSTM forward in one kernel; everything VMEM-resident, no grid.

    ids_ref   : ((T+1)*B, 1) int32 token ids, row index = t*B + b
                (last B rows are padding whose output is never used).
    slab_ref  : (PARAM_ROWS, 8H) f32 packed parameters (see OFF_* layout above).
    state_ref : (B, 4H) f32 initial state, lanes = [h0_init | h1_init | c0_init | c1_init].
    out_ref   : (2B, 4H) f32: rows [0,B)  = [h0_N | h1_N | c0_N | c1_N],
                              rows [B,2B) = sigmoid(fc(h1_N)) broadcast over lanes.
    """
    H2, H4, H8 = 2 * H, 4 * H, 8 * H

    # ---- static parameter views of the packed slab (zero-cost slices) ----
    wih0 = slab_ref[OFF_WIH0:OFF_WIH0 + E, :]           # (E, 8H)  layer-1 columns are zero
    bias = slab_ref[OFF_BIAS:OFF_BIAS + 1, :]           # (1, 8H)  fused-layout [b0 | b1]
    wrec = slab_ref[OFF_WBIG:OFF_WBIG + H2, :]          # (2H, 8H) [[whh0, wih1], [0, whh1]]
    wfc = slab_ref[OFF_FC:OFF_FC + 1, 0:H]              # (1, H)
    bfc = slab_ref[OFF_FC:OFF_FC + 1, H:H + 1]          # (1, 1)
    emb = slab_ref[OFF_EMB:OFF_EMB + VP, 0:E]           # (VP, E)

    # ---- embedding lookup fused in-kernel: one-hot matmul on the MXU ----
    ids = ids_ref[...]                                                        # ((T+1)*B, 1)
    onehot = (ids == jax.lax.broadcasted_iota(jnp.int32, ((T + 1) * B, VP), 1)
              ).astype(jnp.float32)                                           # ((T+1)*B, VP)
    x_all = jnp.dot(onehot, emb, preferred_element_type=jnp.float32)          # ((T+1)*B, E)

    # ---- hoisted layer-0 input projection, already in the fused gate layout ----
    # Column blocks: [i0|i1, f0|f1, g0|g1, o0|o1]; layer-1 columns only receive b1.
    gxb = jnp.dot(x_all, wih0, preferred_element_type=jnp.float32) + bias     # ((T+1)*B, 8H)

    # ---- wavefront recurrence over both layers: T+1 dependent steps (not 2T) ----
    h01 = state_ref[:, 0:H2]                 # (B, 2H) = [h0 | h1]
    c01 = state_ref[:, H2:H4]                # (B, 2H) = [c0 | c1]
    layer0_lane = jax.lax.broadcasted_iota(jnp.int32, (B, H2), 1) < H

    h0_fin = h01[:, 0:H]
    c0_fin = c01[:, 0:H]
    for s in range(T + 1):
        gates = jnp.dot(h01, wrec, preferred_element_type=jnp.float32) \
            + gxb[s * B:(s + 1) * B, :]                                       # (B, 8H)
        # One full-tile sigmoid (covers i, f, o of both layers) + tanh on the g block.
        sig_all = jax.nn.sigmoid(gates)
        i01 = sig_all[:, 0:H2]
        f01 = sig_all[:, H2:2 * H2]
        g01 = jnp.tanh(gates[:, 2 * H2:3 * H2])
        o01 = sig_all[:, 3 * H2:4 * H2]
        c_new = f01 * c01 + i01 * g01
        h_new = o01 * jnp.tanh(c_new)
        if s == 0:
            # Wavefront warm-up: layer-1 would compute "timestep -1"; keep its init state.
            c01 = jnp.where(layer0_lane, c_new, c01)
            h01 = jnp.where(layer0_lane, h_new, h01)
        else:
            c01 = c_new
            h01 = h_new
        if s == T - 1:
            # Layer 0 just produced its last real timestep; snapshot before the final
            # wavefront step overwrites that half of the state with unused junk.
            h0_fin = h01[:, 0:H]
            c0_fin = c01[:, 0:H]
    h1_fin = h01[:, H:H2]
    c1_fin = c01[:, H:H2]

    # ---- dropout(0.3) identity in eval; classifier only on the last layer-1 hidden ----
    # (== sig.view(B, -1)[:, -1] of the PyTorch module) — VPU reduction, no N=1 MXU matmul.
    logit = jnp.sum(h1_fin * wfc, axis=-1, keepdims=True) + bfc               # (B, 1)
    sig = jax.nn.sigmoid(logit)

    out_ref[...] = jnp.concatenate(
        [jnp.concatenate([h0_fin, h1_fin, c0_fin, c1_fin], axis=1),           # (B, 4H)
         jnp.broadcast_to(sig, (B, H4))], axis=0)                             # (2B, 4H)


# ----------------------------- parameter init ------------------------------------
def init_params(key):
    ks = jax.random.split(key, 12)
    H, E = HIDDEN_DIM, EMBEDDING_DIM
    s = 1.0 / jnp.sqrt(H)
    return {
        "embedding": jax.random.normal(ks[0], (VOCAB_SIZE, E), jnp.float32) * 0.1,
        # layer 0 (input size E), layer 1 (input size H); stored pre-transposed, gate order i,f,g,o
        "w_ih_0": jax.random.uniform(ks[1], (E, 4 * H), jnp.float32, -s, s),
        "w_hh_0": jax.random.uniform(ks[2], (H, 4 * H), jnp.float32, -s, s),
        "b_0": jax.random.uniform(ks[3], (1, 4 * H), jnp.float32, -s, s)
               + jax.random.uniform(ks[4], (1, 4 * H), jnp.float32, -s, s),
        "w_ih_1": jax.random.uniform(ks[5], (H, 4 * H), jnp.float32, -s, s),
        "w_hh_1": jax.random.uniform(ks[6], (H, 4 * H), jnp.float32, -s, s),
        "b_1": jax.random.uniform(ks[7], (1, 4 * H), jnp.float32, -s, s)
               + jax.random.uniform(ks[8], (1, 4 * H), jnp.float32, -s, s),
        # fc.weight layout matches PyTorch nn.Linear: (out_features, in_features) = (1, H)
        "w_fc": jax.random.uniform(ks[9], (OUTPUT_SIZE, H), jnp.float32, -s, s),
        "b_fc": jax.random.uniform(ks[10], (1, OUTPUT_SIZE), jnp.float32, -s, s),
    }


def pack_params(params):
    """One-time packing of all weights into a single (PARAM_ROWS, 8H) f32 slab."""
    H, E, VP = HIDDEN_DIM, EMBEDDING_DIM, VOCAB_PAD
    H8 = 8 * H

    def fuse_cols(m0, m1):
        # Interleave per-gate column blocks: [i0|i1, f0|f1, g0|g1, o0|o1].
        blocks = []
        for gi in range(4):
            blocks.append(m0[:, gi * H:(gi + 1) * H])
            blocks.append(m1[:, gi * H:(gi + 1) * H])
        return jnp.concatenate(blocks, axis=1)

    zE = jnp.zeros((E, 4 * H), jnp.float32)
    zH = jnp.zeros((H, 4 * H), jnp.float32)
    wih0_big = fuse_cols(params["w_ih_0"], zE)                    # (E, 8H)
    bias_big = fuse_cols(params["b_0"], params["b_1"])            # (1, 8H)
    w_top = fuse_cols(params["w_hh_0"], params["w_ih_1"])         # (H, 8H)  contribution of h0
    w_bot = fuse_cols(zH, params["w_hh_1"])                       # (H, 8H)  contribution of h1
    w_big = jnp.concatenate([w_top, w_bot], axis=0)               # (2H, 8H)

    fc_row = jnp.zeros((1, H8), jnp.float32)
    fc_row = fc_row.at[0, :H].set(params["w_fc"][0])
    fc_row = fc_row.at[0, H].set(params["b_fc"][0, 0])

    emb = jnp.zeros((VP, H8), jnp.float32).at[:VOCAB_SIZE, :E].set(params["embedding"])

    def pad_to(m, rows):
        return jnp.concatenate(
            [m, jnp.zeros((rows - m.shape[0], m.shape[1]), jnp.float32)], axis=0)

    slab = jnp.concatenate([
        wih0_big,                               # rows [OFF_WIH0, OFF_BIAS)
        pad_to(bias_big, OFF_WBIG - OFF_BIAS),  # rows [OFF_BIAS, OFF_WBIG)
        w_big,                                  # rows [OFF_WBIG, OFF_FC)
        pad_to(fc_row, OFF_EMB - OFF_FC),       # rows [OFF_FC,  OFF_EMB)
        emb,                                    # rows [OFF_EMB, PARAM_ROWS)
    ], axis=0)
    assert slab.shape == (PARAM_ROWS, H8)
    return {"slab": slab}


def init_hidden(batch_size):
    z = jnp.zeros((N_LAYERS, batch_size, HIDDEN_DIM), jnp.float32)
    return (z, z)


# ----------------------------- forward (module semantics) ------------------------
@jax.jit
def sentiment_lstm_forward(packed, x_ids, hidden):
    """Mirrors SentimentLSTM.forward: returns (sig_out[:, -1], (h_n, c_n))."""
    h0_all, c0_all = hidden                          # each (n_layers, B, H)
    B, T = x_ids.shape
    H = HIDDEN_DIM

    # Tiny int reshape only (time-major, batch-inner): row t*B + b holds x_ids[b, t].
    # One extra padded timestep block keeps the wavefront loop uniform (output unused).
    ids_flat = jnp.concatenate(
        [jnp.transpose(x_ids).reshape(T * B, 1),
         jnp.zeros((B, 1), x_ids.dtype)], axis=0).astype(jnp.int32)          # ((T+1)*B, 1)

    # Combined state operand, lanes = [h0 | h1 | c0 | c1].
    state0 = jnp.concatenate([h0_all[0], h0_all[1], c0_all[0], c0_all[1]], axis=1)  # (B, 4H)

    kernel = functools.partial(fused_sentiment_lstm_kernel,
                               T=T, B=B, H=H, E=EMBEDDING_DIM, VP=VOCAB_PAD)
    out = pl.pallas_call(
        kernel,
        out_shape=jax.ShapeDtypeStruct((2 * B, 4 * H), jnp.float32),
        # generous explicit VMEM budget; total footprint here is < 300 KB
        compiler_params=pltpu.CompilerParams(vmem_limit_bytes=16 * 1024 * 1024),
    )(ids_flat, packed["slab"], state0)

    states = out[:B, :]
    h_n = jnp.stack([states[:, 0:H], states[:, H:2 * H]], axis=0)
    c_n = jnp.stack([states[:, 2 * H:3 * H], states[:, 3 * H:4 * H]], axis=0)
    sig_out = out[B:2 * B, 0]                        # == sig.view(B, -1)[:, -1]
    return sig_out, (h_n, c_n)


# ----------------------------- pure-JAX reference (for correctness check) --------
def reference_forward(params, x_ids, hidden):
    h_all, c_all = hidden
    B, T = x_ids.shape
    H = HIDDEN_DIM
    x = jnp.take(params["embedding"], x_ids, axis=0)        # (B, T, E)
    h_fin, c_fin = [], []
    for layer in range(N_LAYERS):
        wih = params[f"w_ih_{layer}"]
        whh = params[f"w_hh_{layer}"]
        b = params[f"b_{layer}"]
        h = h_all[layer]
        c = c_all[layer]
        outs = []
        for t in range(T):
            gates = x[:, t, :] @ wih + h @ whh + b
            i = jax.nn.sigmoid(gates[:, 0 * H:1 * H])
            f = jax.nn.sigmoid(gates[:, 1 * H:2 * H])
            g = jnp.tanh(gates[:, 2 * H:3 * H])
            o = jax.nn.sigmoid(gates[:, 3 * H:4 * H])
            c = f * c + i * g
            h = o * jnp.tanh(c)
            outs.append(h)
        x = jnp.stack(outs, axis=1)                          # (B, T, H)
        h_fin.append(h)
        c_fin.append(c)
    logits = x[:, -1, :] @ params["w_fc"].T + params["b_fc"]
    sig = jax.nn.sigmoid(logits)[:, 0]
    return sig, (jnp.stack(h_fin, axis=0), jnp.stack(c_fin, axis=0))


# ----------------------------- main ----------------------------------------------
if __name__ == "__main__":
    key = jax.random.PRNGKey(0)
    pkey, xkey = jax.random.split(key)
    params = init_params(pkey)
    packed = pack_params(params)      # one-time packing, outside the jitted forward

    x_ids = jax.random.randint(xkey, (BATCH, SEQ), 0, VOCAB_SIZE, dtype=jnp.int32)
    hidden = init_hidden(BATCH)

    sig_out, (h_n, c_n) = sentiment_lstm_forward(packed, x_ids, hidden)
    jax.block_until_ready((sig_out, h_n, c_n))

    assert sig_out.shape == (BATCH,)
    assert h_n.shape == (N_LAYERS, BATCH, HIDDEN_DIM)
    assert c_n.shape == (N_LAYERS, BATCH, HIDDEN_DIM)

    ref_sig, (ref_h, ref_c) = reference_forward(params, x_ids, hidden)
    assert bool(jnp.allclose(sig_out, ref_sig, atol=1e-3, rtol=1e-3))
    assert bool(jnp.allclose(h_n, ref_h, atol=1e-3, rtol=1e-3))
    assert bool(jnp.allclose(c_n, ref_c, atol=1e-3, rtol=1e-3))

    print("KERNEL_OK")
</pallas_src>

<mosaic_0001>
module attributes {stable_mosaic.version = 11 : i64} {
  func.func @fused_sentiment_lstm_kernel(%arg0: memref<18x1xi32, #tpu.memory_space<vmem>>, %arg1: memref<176x256xf32, #tpu.memory_space<vmem>>, %arg2: memref<2x128xf32, #tpu.memory_space<vmem>>, %arg3: memref<4x128xf32, #tpu.memory_space<vmem>>) attributes {dimension_semantics = [], scalar_prefetch = 0 : i64, scratch_operands = 0 : i64, tpu.core_type = #tpu.core_type<tc>} {
    %c0 = arith.constant 0 : index
    %c0_0 = arith.constant 0 : index
    %0 = vector.load %arg1[%c0, %c0_0] : memref<176x256xf32, #tpu.memory_space<vmem>>, vector<32x256xf32>
    %c32 = arith.constant 32 : index
    %c0_1 = arith.constant 0 : index
    %1 = vector.load %arg1[%c32, %c0_1] : memref<176x256xf32, #tpu.memory_space<vmem>>, vector<1x256xf32>
    %c40 = arith.constant 40 : index
    %c0_2 = arith.constant 0 : index
    %2 = vector.load %arg1[%c40, %c0_2] : memref<176x256xf32, #tpu.memory_space<vmem>>, vector<64x256xf32>
    %c104 = arith.constant 104 : index
    %c0_3 = arith.constant 0 : index
    %3 = vector.load %arg1[%c104, %c0_3] : memref<176x256xf32, #tpu.memory_space<vmem>>, vector<1x32xf32>
    %c104_4 = arith.constant 104 : index
    %c32_5 = arith.constant 32 : index
    %4 = vector.load %arg1[%c104_4, %c32_5] : memref<176x256xf32, #tpu.memory_space<vmem>>, vector<1x1xf32>
    %c112 = arith.constant 112 : index
    %c0_6 = arith.constant 0 : index
    %5 = vector.load %arg1[%c112, %c0_6] : memref<176x256xf32, #tpu.memory_space<vmem>>, vector<64x32xf32>
    %c0_7 = arith.constant 0 : index
    %c0_8 = arith.constant 0 : index
    %6 = vector.load %arg0[%c0_7, %c0_8] : memref<18x1xi32, #tpu.memory_space<vmem>>, vector<18x1xi32>
    %7 = tpu.iota {dimensions = array<i32: 1>} : vector<18x64xi32>
    %8 = vector.broadcast %6 : vector<18x1xi32> to vector<18x64xi32>
    %9 = arith.cmpi eq, %8, %7 : vector<18x64xi32>
    %10 = arith.extui %9 : vector<18x64xi1> to vector<18x64xi32>
    %11 = arith.sitofp %10 : vector<18x64xi32> to vector<18x64xf32>
    %cst = arith.constant dense<0.000000e+00> : vector<18x32xf32>
    %12 = tpu.matmul %11, %5, %cst {dimension_numbers = #tpu.dot_dimension_numbers<[1], [0], [0], [1], [0, 0, 1, 1], [], []>} : vector<18x64xf32>, vector<64x32xf32>, vector<18x32xf32> -> vector<18x32xf32>
    %cst_9 = arith.constant dense<0.000000e+00> : vector<18x256xf32>
    %13 = tpu.matmul %12, %0, %cst_9 {dimension_numbers = #tpu.dot_dimension_numbers<[1], [0], [0], [1], [0, 0, 1, 1], [], []>} : vector<18x32xf32>, vector<32x256xf32>, vector<18x256xf32> -> vector<18x256xf32>
    %14 = vector.broadcast %1 : vector<1x256xf32> to vector<18x256xf32>
    %15 = arith.addf %13, %14 : vector<18x256xf32>
    %c0_10 = arith.constant 0 : index
    %c0_11 = arith.constant 0 : index
    %16 = vector.load %arg2[%c0_10, %c0_11] : memref<2x128xf32, #tpu.memory_space<vmem>>, vector<2x64xf32>
    %c0_12 = arith.constant 0 : index
    %c64 = arith.constant 64 : index
    %17 = vector.load %arg2[%c0_12, %c64] : memref<2x128xf32, #tpu.memory_space<vmem>>, vector<2x64xf32>
    %18 = tpu.iota {dimensions = array<i32: 1>} : vector<2x64xi32>
    %c32_i32 = arith.constant 32 : i32
    %19 = vector.broadcast %c32_i32 : i32 to vector<2x64xi32>
    %20 = arith.cmpi slt, %18, %19 : vector<2x64xi32>
    %cst_13 = arith.constant dense<0.000000e+00> : vector<2x256xf32>
    %21 = tpu.matmul %16, %2, %cst_13 {dimension_numbers = #tpu.dot_dimension_numbers<[1], [0], [0], [1], [0, 0, 1, 1], [], []>} : vector<2x64xf32>, vector<64x256xf32>, vector<2x256xf32> -> vector<2x256xf32>
    %22 = vector.extract_strided_slice %15 {offsets = [0, 0], sizes = [2, 256], strides = [1, 1]} : vector<18x256xf32> to vector<2x256xf32>
    %23 = arith.addf %21, %22 : vector<2x256xf32>
    %24 = arith.negf %23 : vector<2x256xf32>
    %25 = math.exp %24 : vector<2x256xf32>
    %cst_14 = arith.constant 1.000000e+00 : f32
    %26 = vector.broadcast %cst_14 : f32 to vector<2x256xf32>
    %27 = arith.addf %26, %25 : vector<2x256xf32>
    %28 = arith.divf %26, %27 : vector<2x256xf32>
    %29 = vector.extract_strided_slice %28 {offsets = [0, 0], sizes = [2, 64], strides = [1, 1]} : vector<2x256xf32> to vector<2x64xf32>
    %30 = vector.extract_strided_slice %28 {offsets = [0, 64], sizes = [2, 64], strides = [1, 1]} : vector<2x256xf32> to vector<2x64xf32>
    %31 = vector.extract_strided_slice %23 {offsets = [0, 128], sizes = [2, 64], strides = [1, 1]} : vector<2x256xf32> to vector<2x64xf32>
    %32 = math.tanh %31 : vector<2x64xf32>
    %33 = vector.extract_strided_slice %28 {offsets = [0, 192], sizes = [2, 64], strides = [1, 1]} : vector<2x256xf32> to vector<2x64xf32>
    %34 = arith.mulf %30, %17 : vector<2x64xf32>
    %35 = arith.mulf %29, %32 : vector<2x64xf32>
    %36 = arith.addf %34, %35 : vector<2x64xf32>
    %37 = math.tanh %36 : vector<2x64xf32>
    %38 = arith.mulf %33, %37 : vector<2x64xf32>
    %39 = arith.select %20, %36, %17 : vector<2x64xi1>, vector<2x64xf32>
    %40 = arith.select %20, %38, %16 : vector<2x64xi1>, vector<2x64xf32>
    %cst_15 = arith.constant dense<0.000000e+00> : vector<2x256xf32>
    %41 = tpu.matmul %40, %2, %cst_15 {dimension_numbers = #tpu.dot_dimension_numbers<[1], [0], [0], [1], [0, 0, 1, 1], [], []>} : vector<2x64xf32>, vector<64x256xf32>, vector<2x256xf32> -> vector<2x256xf32>
    %42 = vector.extract_strided_slice %15 {offsets = [2, 0], sizes = [2, 256], strides = [1, 1]} : vector<18x256xf32> to vector<2x256xf32>
    %43 = arith.addf %41, %42 : vector<2x256xf32>
    %44 = arith.negf %43 : vector<2x256xf32>
    %45 = math.exp %44 : vector<2x256xf32>
    %cst_16 = arith.constant 1.000000e+00 : f32
    %46 = vector.broadcast %cst_16 : f32 to vector<2x256xf32>
    %47 = arith.addf %46, %45 : vector<2x256xf32>
    %48 = arith.divf %46, %47 : vector<2x256xf32>
    %49 = vector.extract_strided_slice %48 {offsets = [0, 0], sizes = [2, 64], strides = [1, 1]} : vector<2x256xf32> to vector<2x64xf32>
    %50 = vector.extract_strided_slice %48 {offsets = [0, 64], sizes = [2, 64], strides = [1, 1]} : vector<2x256xf32> to vector<2x64xf32>
    %51 = vector.extract_strided_slice %43 {offsets = [0, 128], sizes = [2, 64], strides = [1, 1]} : vector<2x256xf32> to vector<2x64xf32>
    %52 = math.tanh %51 : vector<2x64xf32>
    %53 = vector.extract_strided_slice %48 {offsets = [0, 192], sizes = [2, 64], strides = [1, 1]} : vector<2x256xf32> to vector<2x64xf32>
    %54 = arith.mulf %50, %39 : vector<2x64xf32>
    %55 = arith.mulf %49, %52 : vector<2x64xf32>
    %56 = arith.addf %54, %55 : vector<2x64xf32>
    %57 = math.tanh %56 : vector<2x64xf32>
    %58 = arith.mulf %53, %57 : vector<2x64xf32>
    %cst_17 = arith.constant dense<0.000000e+00> : vector<2x256xf32>
    %59 = tpu.matmul %58, %2, %cst_17 {dimension_numbers = #tpu.dot_dimension_numbers<[1], [0], [0], [1], [0, 0, 1, 1], [], []>} : vector<2x64xf32>, vector<64x256xf32>, vector<2x256xf32> -> vector<2x256xf32>
    %60 = vector.extract_strided_slice %15 {offsets = [4, 0], sizes = [2, 256], strides = [1, 1]} : vector<18x256xf32> to vector<2x256xf32>
    %61 = arith.addf %59, %60 : vector<2x256xf32>
    %62 = arith.negf %61 : vector<2x256xf32>
    %63 = math.exp %62 : vector<2x256xf32>
    %cst_18 = arith.constant 1.000000e+00 : f32
    %64 = vector.broadcast %cst_18 : f32 to vector<2x256xf32>
    %65 = arith.addf %64, %63 : vector<2x256xf32>
    %66 = arith.divf %64, %65 : vector<2x256xf32>
    %67 = vector.extract_strided_slice %66 {offsets = [0, 0], sizes = [2, 64], strides = [1, 1]} : vector<2x256xf32> to vector<2x64xf32>
    %68 = vector.extract_strided_slice %66 {offsets = [0, 64], sizes = [2, 64], strides = [1, 1]} : vector<2x256xf32> to vector<2x64xf32>
    %69 = vector.extract_strided_slice %61 {offsets = [0, 128], sizes = [2, 64], strides = [1, 1]} : vector<2x256xf32> to vector<2x64xf32>
    %70 = math.tanh %69 : vector<2x64xf32>
    %71 = vector.extract_strided_slice %66 {offsets = [0, 192], sizes = [2, 64], strides = [1, 1]} : vector<2x256xf32> to vector<2x64xf32>
    %72 = arith.mulf %68, %56 : vector<2x64xf32>
    %73 = arith.mulf %67, %70 : vector<2x64xf32>
    %74 = arith.addf %72, %73 : vector<2x64xf32>
    %75 = math.tanh %74 : vector<2x64xf32>
    %76 = arith.mulf %71, %75 : vector<2x64xf32>
    %cst_19 = arith.constant dense<0.000000e+00> : vector<2x256xf32>
    %77 = tpu.matmul %76, %2, %cst_19 {dimension_numbers = #tpu.dot_dimension_numbers<[1], [0], [0], [1], [0, 0, 1, 1], [], []>} : vector<2x64xf32>, vector<64x256xf32>, vector<2x256xf32> -> vector<2x256xf32>
    %78 = vector.extract_strided_slice %15 {offsets = [6, 0], sizes = [2, 256], strides = [1, 1]} : vector<18x256xf32> to vector<2x256xf32>
    %79 = arith.addf %77, %78 : vector<2x256xf32>
    %80 = arith.negf %79 : vector<2x256xf32>
    %81 = math.exp %80 : vector<2x256xf32>
    %cst_20 = arith.constant 1.000000e+00 : f32
    %82 = vector.broadcast %cst_20 : f32 to vector<2x256xf32>
    %83 = arith.addf %82, %81 : vector<2x256xf32>
    %84 = arith.divf %82, %83 : vector<2x256xf32>
    %85 = vector.extract_strided_slice %84 {offsets = [0, 0], sizes = [2, 64], strides = [1, 1]} : vector<2x256xf32> to vector<2x64xf32>
    %86 = vector.extract_strided_slice %84 {offsets = [0, 64], sizes = [2, 64], strides = [1, 1]} : vector<2x256xf32> to vector<2x64xf32>
    %87 = vector.extract_strided_slice %79 {offsets = [0, 128], sizes = [2, 64], strides = [1, 1]} : vector<2x256xf32> to vector<2x64xf32>
    %88 = math.tanh %87 : vector<2x64xf32>
    %89 = vector.extract_strided_slice %84 {offsets = [0, 192], sizes = [2, 64], strides = [1, 1]} : vector<2x256xf32> to vector<2x64xf32>
    %90 = arith.mulf %86, %74 : vector<2x64xf32>
    %91 = arith.mulf %85, %88 : vector<2x64xf32>
    %92 = arith.addf %90, %91 : vector<2x64xf32>
    %93 = math.tanh %92 : vector<2x64xf32>
    %94 = arith.mulf %89, %93 : vector<2x64xf32>
    %cst_21 = arith.constant dense<0.000000e+00> : vector<2x256xf32>
    %95 = tpu.matmul %94, %2, %cst_21 {dimension_numbers = #tpu.dot_dimension_numbers<[1], [0], [0], [1], [0, 0, 1, 1], [], []>} : vector<2x64xf32>, vector<64x256xf32>, vector<2x256xf32> -> vector<2x256xf32>
    %96 = vector.extract_strided_slice %15 {offsets = [8, 0], sizes = [2, 256], strides = [1, 1]} : vector<18x256xf32> to vector<2x256xf32>
    %97 = arith.addf %95, %96 : vector<2x256xf32>
    %98 = arith.negf %97 : vector<2x256xf32>
    %99 = math.exp %98 : vector<2x256xf32>
    %cst_22 = arith.constant 1.000000e+00 : f32
    %100 = vector.broadcast %cst_22 : f32 to vector<2x256xf32>
    %101 = arith.addf %100, %99 : vector<2x256xf32>
    %102 = arith.divf %100, %101 : vector<2x256xf32>
    %103 = vector.extract_strided_slice %102 {offsets = [0, 0], sizes = [2, 64], strides = [1, 1]} : vector<2x256xf32> to vector<2x64xf32>
    %104 = vector.extract_strided_slice %102 {offsets = [0, 64], sizes = [2, 64], strides = [1, 1]} : vector<2x256xf32> to vector<2x64xf32>
    %105 = vector.extract_strided_slice %97 {offsets = [0, 128], sizes = [2, 64], strides = [1, 1]} : vector<2x256xf32> to vector<2x64xf32>
    %106 = math.tanh %105 : vector<2x64xf32>
    %107 = vector.extract_strided_slice %102 {offsets = [0, 192], sizes = [2, 64], strides = [1, 1]} : vector<2x256xf32> to vector<2x64xf32>
    %108 = arith.mulf %104, %92 : vector<2x64xf32>
    %109 = arith.mulf %103, %106 : vector<2x64xf32>
    %110 = arith.addf %108, %109 : vector<2x64xf32>
    %111 = math.tanh %110 : vector<2x64xf32>
    %112 = arith.mulf %107, %111 : vector<2x64xf32>
    %cst_23 = arith.constant dense<0.000000e+00> : vector<2x256xf32>
    %113 = tpu.matmul %112, %2, %cst_23 {dimension_numbers = #tpu.dot_dimension_numbers<[1], [0], [0], [1], [0, 0, 1, 1], [], []>} : vector<2x64xf32>, vector<64x256xf32>, vector<2x256xf32> -> vector<2x256xf32>
    %114 = vector.extract_strided_slice %15 {offsets = [10, 0], sizes = [2, 256], strides = [1, 1]} : vector<18x256xf32> to vector<2x256xf32>
    %115 = arith.addf %113, %114 : vector<2x256xf32>
    %116 = arith.negf %115 : vector<2x256xf32>
    %117 = math.exp %116 : vector<2x256xf32>
    %cst_24 = arith.constant 1.000000e+00 : f32
    %118 = vector.broadcast %cst_24 : f32 to vector<2x256xf32>
    %119 = arith.addf %118, %117 : vector<2x256xf32>
    %120 = arith.divf %118, %119 : vector<2x256xf32>
    %121 = vector.extract_strided_slice %120 {offsets = [0, 0], sizes = [2, 64], strides = [1, 1]} : vector<2x256xf32> to vector<2x64xf32>
    %122 = vector.extract_strided_slice %120 {offsets = [0, 64], sizes = [2, 64], strides = [1, 1]} : vector<2x256xf32> to vector<2x64xf32>
    %123 = vector.extract_strided_slice %115 {offsets = [0, 128], sizes = [2, 64], strides = [1, 1]} : vector<2x256xf32> to vector<2x64xf32>
    %124 = math.tanh %123 : vector<2x64xf32>
    %125 = vector.extract_strided_slice %120 {offsets = [0, 192], sizes = [2, 64], strides = [1, 1]} : vector<2x256xf32> to vector<2x64xf32>
    %126 = arith.mulf %122, %110 : vector<2x64xf32>
    %127 = arith.mulf %121, %124 : vector<2x64xf32>
    %128 = arith.addf %126, %127 : vector<2x64xf32>
    %129 = math.tanh %128 : vector<2x64xf32>
    %130 = arith.mulf %125, %129 : vector<2x64xf32>
    %cst_25 = arith.constant dense<0.000000e+00> : vector<2x256xf32>
    %131 = tpu.matmul %130, %2, %cst_25 {dimension_numbers = #tpu.dot_dimension_numbers<[1], [0], [0], [1], [0, 0, 1, 1], [], []>} : vector<2x64xf32>, vector<64x256xf32>, vector<2x256xf32> -> vector<2x256xf32>
    %132 = vector.extract_strided_slice %15 {offsets = [12, 0], sizes = [2, 256], strides = [1, 1]} : vector<18x256xf32> to vector<2x256xf32>
    %133 = arith.addf %131, %132 : vector<2x256xf32>
    %134 = arith.negf %133 : vector<2x256xf32>
    %135 = math.exp %134 : vector<2x256xf32>
    %cst_26 = arith.constant 1.000000e+00 : f32
    %136 = vector.broadcast %cst_26 : f32 to vector<2x256xf32>
    %137 = arith.addf %136, %135 : vector<2x256xf32>
    %138 = arith.divf %136, %137 : vector<2x256xf32>
    %139 = vector.extract_strided_slice %138 {offsets = [0, 0], sizes = [2, 64], strides = [1, 1]} : vector<2x256xf32> to vector<2x64xf32>
    %140 = vector.extract_strided_slice %138 {offsets = [0, 64], sizes = [2, 64], strides = [1, 1]} : vector<2x256xf32> to vector<2x64xf32>
    %141 = vector.extract_strided_slice %133 {offsets = [0, 128], sizes = [2, 64], strides = [1, 1]} : vector<2x256xf32> to vector<2x64xf32>
    %142 = math.tanh %141 : vector<2x64xf32>
    %143 = vector.extract_strided_slice %138 {offsets = [0, 192], sizes = [2, 64], strides = [1, 1]} : vector<2x256xf32> to vector<2x64xf32>
    %144 = arith.mulf %140, %128 : vector<2x64xf32>
    %145 = arith.mulf %139, %142 : vector<2x64xf32>
    %146 = arith.addf %144, %145 : vector<2x64xf32>
    %147 = math.tanh %146 : vector<2x64xf32>
    %148 = arith.mulf %143, %147 : vector<2x64xf32>
    %cst_27 = arith.constant dense<0.000000e+00> : vector<2x256xf32>
    %149 = tpu.matmul %148, %2, %cst_27 {dimension_numbers = #tpu.dot_dimension_numbers<[1], [0], [0], [1], [0, 0, 1, 1], [], []>} : vector<2x64xf32>, vector<64x256xf32>, vector<2x256xf32> -> vector<2x256xf32>
    %150 = vector.extract_strided_slice %15 {offsets = [14, 0], sizes = [2, 256], strides = [1, 1]} : vector<18x256xf32> to vector<2x256xf32>
    %151 = arith.addf %149, %150 : vector<2x256xf32>
    %152 = arith.negf %151 : vector<2x256xf32>
    %153 = math.exp %152 : vector<2x256xf32>
    %cst_28 = arith.constant 1.000000e+00 : f32
    %154 = vector.broadcast %cst_28 : f32 to vector<2x256xf32>
    %155 = arith.addf %154, %153 : vector<2x256xf32>
    %156 = arith.divf %154, %155 : vector<2x256xf32>
    %157 = vector.extract_strided_slice %156 {offsets = [0, 0], sizes = [2, 64], strides = [1, 1]} : vector<2x256xf32> to vector<2x64xf32>
    %158 = vector.extract_strided_slice %156 {offsets = [0, 64], sizes = [2, 64], strides = [1, 1]} : vector<2x256xf32> to vector<2x64xf32>
    %159 = vector.extract_strided_slice %151 {offsets = [0, 128], sizes = [2, 64], strides = [1, 1]} : vector<2x256xf32> to vector<2x64xf32>
    %160 = math.tanh %159 : vector<2x64xf32>
    %161 = vector.extract_strided_slice %156 {offsets = [0, 192], sizes = [2, 64], strides = [1, 1]} : vector<2x256xf32> to vector<2x64xf32>
    %162 = arith.mulf %158, %146 : vector<2x64xf32>
    %163 = arith.mulf %157, %160 : vector<2x64xf32>
    %164 = arith.addf %162, %163 : vector<2x64xf32>
    %165 = math.tanh %164 : vector<2x64xf32>
    %166 = arith.mulf %161, %165 : vector<2x64xf32>
    %167 = vector.extract_strided_slice %166 {offsets = [0, 0], sizes = [2, 32], strides = [1, 1]} : vector<2x64xf32> to vector<2x32xf32>
    %168 = vector.extract_strided_slice %164 {offsets = [0, 0], sizes = [2, 32], strides = [1, 1]} : vector<2x64xf32> to vector<2x32xf32>
    %cst_29 = arith.constant dense<0.000000e+00> : vector<2x256xf32>
    %169 = tpu.matmul %166, %2, %cst_29 {dimension_numbers = #tpu.dot_dimension_numbers<[1], [0], [0], [1], [0, 0, 1, 1], [], []>} : vector<2x64xf32>, vector<64x256xf32>, vector<2x256xf32> -> vector<2x256xf32>
    %170 = vector.extract_strided_slice %15 {offsets = [16, 0], sizes = [2, 256], strides = [1, 1]} : vector<18x256xf32> to vector<2x256xf32>
    %171 = arith.addf %169, %170 : vector<2x256xf32>
    %172 = arith.negf %171 : vector<2x256xf32>
    %173 = math.exp %172 : vector<2x256xf32>
    %cst_30 = arith.constant 1.000000e+00 : f32
    %174 = vector.broadcast %cst_30 : f32 to vector<2x256xf32>
    %175 = arith.addf %174, %173 : vector<2x256xf32>
    %176 = arith.divf %174, %175 : vector<2x256xf32>
    %177 = vector.extract_strided_slice %176 {offsets = [0, 0], sizes = [2, 64], strides = [1, 1]} : vector<2x256xf32> to vector<2x64xf32>
    %178 = vector.extract_strided_slice %176 {offsets = [0, 64], sizes = [2, 64], strides = [1, 1]} : vector<2x256xf32> to vector<2x64xf32>
    %179 = vector.extract_strided_slice %171 {offsets = [0, 128], sizes = [2, 64], strides = [1, 1]} : vector<2x256xf32> to vector<2x64xf32>
    %180 = math.tanh %179 : vector<2x64xf32>
    %181 = vector.extract_strided_slice %176 {offsets = [0, 192], sizes = [2, 64], strides = [1, 1]} : vector<2x256xf32> to vector<2x64xf32>
    %182 = arith.mulf %178, %164 : vector<2x64xf32>
    %183 = arith.mulf %177, %180 : vector<2x64xf32>
    %184 = arith.addf %182, %183 : vector<2x64xf32>
    %185 = math.tanh %184 : vector<2x64xf32>
    %186 = arith.mulf %181, %185 : vector<2x64xf32>
    %187 = vector.extract_strided_slice %186 {offsets = [0, 32], sizes = [2, 32], strides = [1, 1]} : vector<2x64xf32> to vector<2x32xf32>
    %188 = vector.extract_strided_slice %184 {offsets = [0, 32], sizes = [2, 32], strides = [1, 1]} : vector<2x64xf32> to vector<2x32xf32>
    %189 = vector.broadcast %3 : vector<1x32xf32> to vector<2x32xf32>
    %190 = arith.mulf %187, %189 : vector<2x32xf32>
    %cst_31 = arith.constant dense<0.000000e+00> : vector<2xf32>
    %191 = vector.multi_reduction <add>, %190, %cst_31 [1] : vector<2x32xf32> to vector<2xf32>
    %192 = vector.shape_cast %191 : vector<2xf32> to vector<2x1xf32>
    %193 = vector.broadcast %4 : vector<1x1xf32> to vector<2x1xf32>
    %194 = arith.addf %192, %193 : vector<2x1xf32>
    %195 = arith.negf %194 : vector<2x1xf32>
    %196 = math.exp %195 : vector<2x1xf32>
    %cst_32 = arith.constant 1.000000e+00 : f32
    %197 = vector.broadcast %cst_32 : f32 to vector<2x1xf32>
    %198 = arith.addf %197, %196 : vector<2x1xf32>
    %199 = arith.divf %197, %198 : vector<2x1xf32>
    %200 = tpu.concatenate %167, %187, %168, %188 in 1 : vector<2x32xf32>, vector<2x32xf32>, vector<2x32xf32>, vector<2x32xf32> -> vector<2x128xf32>
    %201 = vector.shape_cast %199 : vector<2x1xf32> to vector<2x1xf32>
    %202 = vector.broadcast %201 : vector<2x1xf32> to vector<2x128xf32>
    %203 = tpu.concatenate %200, %202 in 0 : vector<2x128xf32>, vector<2x128xf32> -> vector<4x128xf32>
    %c0_33 = arith.constant 0 : index
    %c0_34 = arith.constant 0 : index
    %204 = vector.load %arg3[%c0_33, %c0_34] : memref<4x128xf32, #tpu.memory_space<vmem>>, vector<4x128xf32>
    tpu.vector_store %arg3[%c0_33, %c0_34], %203 {strides = array<i32>} : memref<4x128xf32, #tpu.memory_space<vmem>>, vector<4x128xf32>,
    return
  }
}

</mosaic_0001>

<llo_original>
// kernel: sentiment_lstm_forward.1
$region0: #{sentiment_lstm_forward.1}
  #allocation0 [shape = 'u32[]', space=smem, size = 0x4, offset = 0x4, fixed_abs, tag = 'smem constant byte address 0x4 - core index']
  #allocation1 [shape = 'u32[144,128]{1,0:T(1,128)}', space=vmem, size = 0x12000, scoped, tag = 'internal scratch']
  %s0 = inlined_call_operand.vmem [shape: s32[18,1], index: 0, kind: input, shape index: {}]
  %s1 = inlined_call_operand.hbm [shape: f32[176,256], index: 1, kind: input, shape index: {}]
  %s2 = inlined_call_operand.vmem [shape: f32[2,128], index: 2, kind: input, shape index: {}]
  %s3 = inlined_call_operand.vmem [shape: f32[4,128], index: 3, kind: output, shape index: {}]
  %s4 = sld [smem:[#allocation0]]
  $region26: #{sentiment_lstm_forward.1} parent=0
    _
  %s6 = ssub.s32 1, %s4
  %s7 = scalar_select 0, %s6, %s4
  $region1: #{sentiment_lstm_forward.1} parent=0
    #allocation2 [shape = 'u8[180224]{0}', space=vmem, size = 0x2c000, scoped, tag = 'input window, operand 1, single buffered']
    #allocation3 [shape = 's32[1]{0}', space=sflag, size = 0x4, scoped, tag = 'scoped memory for sentiment_lstm_forward.1']
    %8 = vsyncpa [#allocation3], 0
    // Predicated region
    $region2: #{sentiment_lstm_forward.1} parent=1 // pred_check
      _
    $region3: #{sentiment_lstm_forward.1} parent=1 // pred_check_branch
      %10 = sbr.rel (0) target = $region5
    $region4: #{sentiment_lstm_forward.1} parent=1 // pred_region
      _
    $region5: #{sentiment_lstm_forward.1} parent=1 // pred_fallthru
      _
    // Predicated region
    $region6: #{sentiment_lstm_forward.1} parent=1 // pred_check
      _
    $region7: #{sentiment_lstm_forward.1} parent=1 // pred_check_branch
      %12 = sbr.rel (0) target = $region9
    $region8: #{sentiment_lstm_forward.1} parent=1 // pred_region
      %s14 = ssub.s32 5632, 5632
      %15 = vsyncadd [#allocation3], %s14
      %s16 = sshll.u32 [#allocation2], 4
      %s17 = int_to_ptr.vmem [resolvable:$true] %s16
      %22 = dma.hbm_to_vmem [thread:$0]  %s1, 5632, %s17, [#allocation3], 256, 256, 16
    $region9: #{sentiment_lstm_forward.1} parent=1 // pred_fallthru
      _
    // Predicated region
    $region10: #{sentiment_lstm_forward.1} parent=1 // pred_check
      _
    $region11: #{sentiment_lstm_forward.1} parent=1 // pred_check_branch
      %24 = sbr.rel (0) target = $region13
    $region12: #{sentiment_lstm_forward.1} parent=1 // pred_region
      _
    $region13: #{sentiment_lstm_forward.1} parent=1 // pred_fallthru
      _
    // Predicated region
    $region14: #{sentiment_lstm_forward.1} parent=1 // pred_check
      _
    $region15: #{sentiment_lstm_forward.1} parent=1 // pred_check_branch
      %26 = sbr.rel (0) target = $region17
    $region16: #{sentiment_lstm_forward.1} parent=1 // pred_region
      %27 = dma.done [#allocation3], 5632
    $region17: #{sentiment_lstm_forward.1} parent=1 // pred_fallthru
      _
    %v28 = vld [vmem:[#allocation2] sm:$0xff]
    %v29 = vld [vmem:[#allocation2 + $0x8] sm:$0xff]
    %v30 = vld [vmem:[#allocation2 + $0x10] sm:$0xff]
    %v31 = vld [vmem:[#allocation2 + $0x18] sm:$0xff]
    %v32 = vld [vmem:[#allocation2 + $0x20] sm:$0xff]
    %v33 = vld [vmem:[#allocation2 + $0x28] sm:$0xff]
    %v34 = vld [vmem:[#allocation2 + $0x30] sm:$0xff]
    %v35 = vld [vmem:[#allocation2 + $0x38] sm:$0xff]
    %s36 = scalar_lea.vmem [#allocation2], 64
    %v37 = vld [vmem:[%s36] ss:$8 sm:$0x3]
    %v38 = vld [vmem:[#allocation2 + $0x50] sm:$0xff]
    %v39 = vld [vmem:[#allocation2 + $0x58] sm:$0xff]
    %v40 = vld [vmem:[#allocation2 + $0x60] sm:$0xff]
    %v41 = vld [vmem:[#allocation2 + $0x68] sm:$0xff]
    %v42 = vld [vmem:[#allocation2 + $0x70] sm:$0xff]
    %v43 = vld [vmem:[#allocation2 + $0x78] sm:$0xff]
    %v44 = vld [vmem:[#allocation2 + $0x80] sm:$0xff]
    %v45 = vld [vmem:[#allocation2 + $0x88] sm:$0xff]
    %v46 = vld [vmem:[#allocation2 + $0x90] sm:$0xff]
    %v47 = vld [vmem:[#allocation2 + $0x98] sm:$0xff]
    %v48 = vld [vmem:[#allocation2 + $0xa0] sm:$0xff]
    %v49 = vld [vmem:[#allocation2 + $0xa8] sm:$0xff]
    %v50 = vld [vmem:[#allocation2 + $0xb0] sm:$0xff]
    %v51 = vld [vmem:[#allocation2 + $0xb8] sm:$0xff]
    %v52 = vld [vmem:[#allocation2 + $0xc0] sm:$0xff]
    %v53 = vld [vmem:[#allocation2 + $0xc8] sm:$0xff]
    %v54 = vld [vmem:[#allocation2 + $0xd0] ss:$0 sm:$0xff]
    %v55 = vld [vmem:[#allocation2 + $0xe0] sm:$0xff]
    %v56 = vld [vmem:[#allocation2 + $0xf0] sm:$0xff]
    %v57 = vld [vmem:[#allocation2 + $0x100] sm:$0xff]
    %v58 = vld [vmem:[#allocation2 + $0x110] sm:$0xff]
    %v59 = vld [vmem:[#allocation2 + $0x120] sm:$0xff]
    %v60 = vld [vmem:[#allocation2 + $0x130] sm:$0xff]
    %v61 = vld [vmem:[#allocation2 + $0x140] sm:$0xff]
    %v62 = vld [vmem:[#allocation2 + $0x150] sm:$0xff]
    %v63 = vld [vmem:[%s0] sm:$0xff]
    %v64 = vld [vmem:[%s0 + $0x8] sm:$0xff]
    %v65 = vld [vmem:[%s0 + $0x10] sm:$0x3]
    %v66 = vlaneseq
    %v67 = vand.u32 %v66, 127
    %68 = vset.pattern.permute.xlu0 0
    %69 = vperm.xlu0 %68, %v63
    %v70 = vpop.permute.xlu0 %69
    %71 = vset.pattern.permute.xlu0 0
    %72 = vperm.xlu0 %71, %v64
    %v73 = vpop.permute.xlu0 %72
    %74 = vset.pattern.permute.xlu0 0
    %75 = vperm.xlu0 %74, %v65
    %v76 = vpop.permute.xlu0 %75
    %vm77 = vcmp.eq.s32.totalorder %v70, %v67
    %vm78 = vcmp.eq.s32.totalorder %v73, %v67
    %vm79 = vcmp.eq.s32.totalorder %v76, %v67
    %v80 = vsel %vm77, 1, 0
    %v81 = vsel %vm78, 1, 0
    %v82 = vsel %vm79, 1, 0
    %v83 = vcvt.s32.f32 %v80
    %v84 = vcvt.s32.f32 %v81
    %v85 = vcvt.s32.f32 %v82
    %vm86 = vcmask 523264
    %v88 = vsel %vm86, %v83, 0
    %v91 = vsel %vm86, %v84, 0
    %v94 = vsel %vm86, %v85, 0
    %96 = vmatprep.subr.mxu0 0.0
    %97 = vmatpush1.msra.mxu0 %v55
    %98 = vmatprep.subr.mxu0 0.0
    %99 = vmatpush1.msra.mxu0 %v56
    %100 = vmatprep.subr.mxu0 0.0
    %101 = vmatpush1.msra.mxu0 %v57
    %102 = vmatprep.subr.mxu0 0.0
    %103 = vmatpush1.msra.mxu0 %v58
    %104 = vmatprep.subr.mxu0 0.0
    %105 = vmatpush1.msra.mxu0 %v59
    %106 = vmatprep.subr.mxu0 0.0
    %107 = vmatpush1.msra.mxu0 %v60
    %108 = vmatprep.subr.mxu0 0.0
    %109 = vmatpush1.msra.mxu0 %v61
    %110 = vmatprep.subr.mxu0 0.0
    %111 = vmatpush1.msra.mxu0 %v62
    %112 = vmatprep.subr.mxu0 0.0
    %113 = vmatpush1.msra.mxu0 0.0
    %114 = vmatprep.subr.mxu0 0.0
    %115 = vmatpush1.msra.mxu0 0.0
    %116 = vmatprep.subr.mxu0 0.0
    %117 = vmatpush1.msra.mxu0 0.0
    %118 = vmatprep.subr.mxu0 0.0
    %119 = vmatpush1.msra.mxu0 0.0
    %120 = vmatprep.subr.mxu0 0.0
    %121 = vmatpush1.msra.mxu0 0.0
    %122 = vmatprep.subr.mxu0 0.0
    %123 = vmatpush1.msra.mxu0 0.0
    %124 = vmatprep.subr.mxu0 0.0
    %125 = vmatpush1.msra.mxu0 0.0
    %126 = vmatprep.subr.mxu0 0.0
    %127 = vmatpush1.msra.mxu0 0.0
    %128 = vmatprep.subr.mxu0 0.0
    %129 = vmatpush1.msra.mxu0 0.0
    %130 = vmatprep.subr.mxu0 0.0
    %131 = vmatpush1.msra.mxu0 0.0
    %132 = vmatprep.subr.mxu0 0.0
    %133 = vmatpush1.msra.mxu0 0.0
    %134 = vmatprep.subr.mxu0 0.0
    %135 = vmatpush1.msra.mxu0 0.0
    %136 = vmatprep.subr.mxu0 0.0
    %137 = vmatpush1.msra.mxu0 0.0
    %138 = vmatprep.subr.mxu0 0.0
    %139 = vmatpush1.msra.mxu0 0.0
    %140 = vmatprep.subr.mxu0 0.0
    %141 = vmatpush1.msra.mxu0 0.0
    %142 = vmatprep.subr.mxu0 0.0
    %143 = vmatpush1.msra.mxu0 0.0
    %144 = vmatprep.subr.mxu0 0.0
    %145 = vmatpush1.msra.mxu0 0.0
    %146 = vmatprep.subr.mxu0 0.0
    %147 = vmatpush1.msra.mxu0 0.0
    %148 = vmatprep.subr.mxu0 0.0
    %149 = vmatpush1.msra.mxu0 0.0
    %150 = vmatprep.subr.mxu0 0.0
    %151 = vmatpush1.msra.mxu0 0.0
    %152 = vmatprep.subr.mxu0 0.0
    %153 = vmatpush1.msra.mxu0 0.0
    %154 = vmatprep.subr.mxu0 0.0
    %155 = vmatpush1.msra.mxu0 0.0
    %156 = vmatprep.subr.mxu0 0.0
    %157 = vmatpush1.msra.mxu0 0.0
    %158 = vmatprep.subr.mxu0 0.0
    %159 = vmatpush1.msra.mxu0 0.0
    %160 = vmatprep.mubr.f32.mxu0 0.0
    %161 = vmatmul.mubr.f32.gmra.mrb[0].mxu0 %v88
    %v162 = vpop.f32.mrb[0].mxu0
    %v163 = vadd.f32 0.0, %v162
    %v164 = vpop.f32.mrb[0].mxu0
    %165 = vmatprep.mubr.f32.mxu0 0.0
    %166 = vmatmul.mubr.f32.gmra.mrb[0].mxu0 %v91
    %v167 = vpop.f32.mrb[0].mxu0
    %v168 = vadd.f32 0.0, %v167
    %v169 = vpop.f32.mrb[0].mxu0
    %170 = vmatprep.mubr.f32.mxu0 0.0
    %171 = vmatmul.mubr.f32.gmra.mrb[0].mxu0 %v94
    %v172 = vpop.f32.mrb[0].mxu0
    %v173 = vadd.f32 0.0, %v172
    %v174 = vpop.f32.mrb[0].mxu0
    %175 = vdwg.mxu0
    %v177 = vlaneseq
    %v178 = vshrl.u32 %v177, 7
    %v179 = vsub.s32 0, %v178
    %v180 = vrot.slane %v37, %v179
    %v181 = vlaneseq
    %v182 = vshrl.u32 %v181, 7
    %v183 = vsub.s32 1, %v182
    %v184 = vrot.slane %v37, %v183
    %vm187 = vcmask 261120
    %v189 = vsel %vm187, %v163, 0
    %v192 = vsel %vm187, %v168, 0
    %v195 = vsel %vm187, %v173, 0
    %197 = vmatprep.subr.mxu0 %v29
    %198 = vmatpush1.msra.mxu0 %v28
    %199 = vmatprep.subr.mxu0 %v31
    %200 = vmatpush1.msra.mxu0 %v30
    %201 = vmatprep.subr.mxu0 %v33
    %202 = vmatpush1.msra.mxu0 %v32
    %203 = vmatprep.subr.mxu0 %v35
    %204 = vmatpush1.msra.mxu0 %v34
    %205 = vmatprep.subr.mxu0 0.0
    %206 = vmatpush1.msra.mxu0 0.0
    %207 = vmatprep.subr.mxu0 0.0
    %208 = vmatpush1.msra.mxu0 0.0
    %209 = vmatprep.subr.mxu0 0.0
    %210 = vmatpush1.msra.mxu0 0.0
    %211 = vmatprep.subr.mxu0 0.0
    %212 = vmatpush1.msra.mxu0 0.0
    %213 = vmatprep.subr.mxu0 0.0
    %214 = vmatpush1.msra.mxu0 0.0
    %215 = vmatprep.subr.mxu0 0.0
    %216 = vmatpush1.msra.mxu0 0.0
    %217 = vmatprep.subr.mxu0 0.0
    %218 = vmatpush1.msra.mxu0 0.0
    %219 = vmatprep.subr.mxu0 0.0
    %220 = vmatpush1.msra.mxu0 0.0
    %221 = vmatprep.subr.mxu0 0.0
    %222 = vmatpush1.msra.mxu0 0.0
    %223 = vmatprep.subr.mxu0 0.0
    %224 = vmatpush1.msra.mxu0 0.0
    %225 = vmatprep.subr.mxu0 0.0
    %226 = vmatpush1.msra.mxu0 0.0
    %227 = vmatprep.subr.mxu0 0.0
    %228 = vmatpush1.msra.mxu0 0.0
    %229 = vmatprep.subr.mxu0 0.0
    %230 = vmatpush1.msra.mxu0 0.0
    %231 = vmatprep.subr.mxu0 0.0
    %232 = vmatpush1.msra.mxu0 0.0
    %233 = vmatprep.subr.mxu0 0.0
    %234 = vmatpush1.msra.mxu0 0.0
    %235 = vmatprep.subr.mxu0 0.0
    %236 = vmatpush1.msra.mxu0 0.0
    %237 = vmatprep.subr.mxu0 0.0
    %238 = vmatpush1.msra.mxu0 0.0
    %239 = vmatprep.subr.mxu0 0.0
    %240 = vmatpush1.msra.mxu0 0.0
    %241 = vmatprep.subr.mxu0 0.0
    %242 = vmatpush1.msra.mxu0 0.0
    %243 = vmatprep.subr.mxu0 0.0
    %244 = vmatpush1.msra.mxu0 0.0
    %245 = vmatprep.subr.mxu0 0.0
    %246 = vmatpush1.msra.mxu0 0.0
    %247 = vmatprep.subr.mxu0 0.0
    %248 = vmatpush1.msra.mxu0 0.0
    %249 = vmatprep.subr.mxu0 0.0
    %250 = vmatpush1.msra.mxu0 0.0
    %251 = vmatprep.subr.mxu0 0.0
    %252 = vmatpush1.msra.mxu0 0.0
    %253 = vmatprep.subr.mxu0 0.0
    %254 = vmatpush1.msra.mxu0 0.0
    %255 = vmatprep.subr.mxu0 0.0
    %256 = vmatpush1.msra.mxu0 0.0
    %257 = vmatprep.subr.mxu0 0.0
    %258 = vmatpush1.msra.mxu0 0.0
    %259 = vmatprep.subr.mxu0 0.0
    %260 = vmatpush1.msra.mxu0 0.0
    %261 = vmatprep.mubr.f32.mxu0 0.0
    %262 = vmatmul.mubr.f32.gmra.mrb[0].mxu0 %v189
    %v263 = vpop.f32.mrb[0].mxu0
    %v264 = vadd.f32 %v180, %v263
    %v265 = vpop.f32.mrb[0].mxu0
    %v266 = vadd.f32 %v184, %v265
    %267 = vmatprep.mubr.f32.mxu0 0.0
    %268 = vmatmul.mubr.f32.gmra.mrb[0].mxu0 %v192
    %v269 = vpop.f32.mrb[0].mxu0
    %v270 = vadd.f32 %v180, %v269
    %v271 = vpop.f32.mrb[0].mxu0
    %v272 = vadd.f32 %v184, %v271
    %273 = vmatprep.mubr.f32.mxu0 0.0
    %274 = vmatmul.mubr.f32.gmra.mrb[0].mxu0 %v195
    %v275 = vpop.f32.mrb[0].mxu0
    %v276 = vadd.f32 %v180, %v275
    %v277 = vpop.f32.mrb[0].mxu0
    %v278 = vadd.f32 %v184, %v277
    %279 = vdwg.mxu0
    %v280 = vld [vmem:[%s2] sm:$0x3]
    %vm281 = vcmp.lt.s32.totalorder %v67, 32
    %v283 = vsel %vm86, %v280, 0
    %285 = vmatprep.subr.mxu0 %v39
    %286 = vmatpush1.msra.mxu0 %v38
    %287 = vmatprep.subr.mxu0 %v41
    %288 = vmatpush1.msra.mxu0 %v40
    %289 = vmatprep.subr.mxu0 %v43
    %290 = vmatpush1.msra.mxu0 %v42
    %291 = vmatprep.subr.mxu0 %v45
    %292 = vmatpush1.msra.mxu0 %v44
    %293 = vmatprep.subr.mxu0 %v47
    %294 = vmatpush1.msra.mxu0 %v46
    %295 = vmatprep.subr.mxu0 %v49
    %296 = vmatpush1.msra.mxu0 %v48
    %297 = vmatprep.subr.mxu0 %v51
    %298 = vmatpush1.msra.mxu0 %v50
    %299 = vmatprep.subr.mxu0 %v53
    %300 = vmatpush1.msra.mxu0 %v52
    %301 = vmatprep.subr.mxu0 0.0
    %302 = vmatpush1.msra.mxu0 0.0
    %303 = vmatprep.subr.mxu0 0.0
    %304 = vmatpush1.msra.mxu0 0.0
    %305 = vmatprep.subr.mxu0 0.0
    %306 = vmatpush1.msra.mxu0 0.0
    %307 = vmatprep.subr.mxu0 0.0
    %308 = vmatpush1.msra.mxu0 0.0
    %309 = vmatprep.subr.mxu0 0.0
    %310 = vmatpush1.msra.mxu0 0.0
    %311 = vmatprep.subr.mxu0 0.0
    %312 = vmatpush1.msra.mxu0 0.0
    %313 = vmatprep.subr.mxu0 0.0
    %314 = vmatpush1.msra.mxu0 0.0
    %315 = vmatprep.subr.mxu0 0.0
    %316 = vmatpush1.msra.mxu0 0.0
    %317 = vmatprep.subr.mxu0 0.0
    %318 = vmatpush1.msra.mxu0 0.0
    %319 = vmatprep.subr.mxu0 0.0
    %320 = vmatpush1.msra.mxu0 0.0
    %321 = vmatprep.subr.mxu0 0.0
    %322 = vmatpush1.msra.mxu0 0.0
    %323 = vmatprep.subr.mxu0 0.0
    %324 = vmatpush1.msra.mxu0 0.0
    %325 = vmatprep.subr.mxu0 0.0
    %326 = vmatpush1.msra.mxu0 0.0
    %327 = vmatprep.subr.mxu0 0.0
    %328 = vmatpush1.msra.mxu0 0.0
    %329 = vmatprep.subr.mxu0 0.0
    %330 = vmatpush1.msra.mxu0 0.0
    %331 = vmatprep.subr.mxu0 0.0
    %332 = vmatpush1.msra.mxu0 0.0
    %333 = vmatprep.subr.mxu0 0.0
    %334 = vmatpush1.msra.mxu0 0.0
    %335 = vmatprep.subr.mxu0 0.0
    %336 = vmatpush1.msra.mxu0 0.0
    %337 = vmatprep.subr.mxu0 0.0
    %338 = vmatpush1.msra.mxu0 0.0
    %339 = vmatprep.subr.mxu0 0.0
    %340 = vmatpush1.msra.mxu0 0.0
    %341 = vmatprep.subr.mxu0 0.0
    %342 = vmatpush1.msra.mxu0 0.0
    %343 = vmatprep.subr.mxu0 0.0
    %344 = vmatpush1.msra.mxu0 0.0
    %345 = vmatprep.subr.mxu0 0.0
    %346 = vmatpush1.msra.mxu0 0.0
    %347 = vmatprep.subr.mxu0 0.0
    %348 = vmatpush1.msra.mxu0 0.0
    %349 = vmatprep.mubr.f32.mxu0 0.0
    %350 = vmatmul.mubr.f32.gmra.mrb[0].mxu0 %v283
    %v351 = vpop.f32.mrb[0].mxu0
    %v352 = vadd.f32 %v264, %v351
    %v353 = vpop.f32.mrb[0].mxu0
    %v354 = vadd.f32 %v266, %v353
    %355 = vdwg.mxu0
    %v356 = vxor.u32 %v352, 2147483648
    %v357 = vxor.u32 %v354, 2147483648
    %v358 = vmul.f32 %v356, 1.442695
    %v359 = vpow.pop %v358
    %v360 = vmul.f32 %v357, 1.442695
    %v361 = vpow.pop %v360
    %v362 = vadd.f32 %v359, 1.0
    %v363 = vadd.f32 %v361, 1.0
    %v364 = vrcp.pop %v362
    %v365 = vmul.f32 1.0, %v364
    %v366 = vrcp.pop %v363
    %v367 = vmul.f32 1.0, %v366
    %v368 = vtanh.pop %v354
    %v369 = vmul.f32 %v365, %v280
    %v370 = vmul.f32 %v365, %v368
    %372 = vrot.lane.b32.xlu0 %v370, 64
    %v373 = vpop.permute.xlu0 %372
    %v375 = vadd.f32 %v369, %v373
    %v376 = vtanh.pop %v375
    %v377 = vmul.f32 %v367, %v376
    %379 = vrot.lane.b32.xlu0 %v375, 64
    %v380 = vpop.permute.xlu0 %379
    %382 = vrot.lane.b32.xlu0 %v280, 64
    %v383 = vpop.permute.xlu0 %382
    %v385 = vsel %vm281, %v380, %v383
    %387 = vrot.lane.b32.xlu0 %v377, 64
    %v388 = vpop.permute.xlu0 %387
    %v390 = vsel %vm281, %v388, %v280
    %v393 = vrot.slane %v264, 2
    %v394 = vrot.slane %v266, 2
    %v398 = vsel %vm86, %v390, 0
    %400 = vmatprep.subr.mxu0 %v39
    %401 = vmatpush1.msra.mxu0 %v38
    %402 = vmatprep.subr.mxu0 %v41
    %403 = vmatpush1.msra.mxu0 %v40
    %404 = vmatprep.subr.mxu0 %v43
    %405 = vmatpush1.msra.mxu0 %v42
    %406 = vmatprep.subr.mxu0 %v45
    %407 = vmatpush1.msra.mxu0 %v44
    %408 = vmatprep.subr.mxu0 %v47
    %409 = vmatpush1.msra.mxu0 %v46
    %410 = vmatprep.subr.mxu0 %v49
    %411 = vmatpush1.msra.mxu0 %v48
    %412 = vmatprep.subr.mxu0 %v51
    %413 = vmatpush1.msra.mxu0 %v50
    %414 = vmatprep.subr.mxu0 %v53
    %415 = vmatpush1.msra.mxu0 %v52
    %416 = vmatprep.subr.mxu0 0.0
    %417 = vmatpush1.msra.mxu0 0.0
    %418 = vmatprep.subr.mxu0 0.0
    %419 = vmatpush1.msra.mxu0 0.0
    %420 = vmatprep.subr.mxu0 0.0
    %421 = vmatpush1.msra.mxu0 0.0
    %422 = vmatprep.subr.mxu0 0.0
    %423 = vmatpush1.msra.mxu0 0.0
    %424 = vmatprep.subr.mxu0 0.0
    %425 = vmatpush1.msra.mxu0 0.0
    %426 = vmatprep.subr.mxu0 0.0
    %427 = vmatpush1.msra.mxu0 0.0
    %428 = vmatprep.subr.mxu0 0.0
    %429 = vmatpush1.msra.mxu0 0.0
    %430 = vmatprep.subr.mxu0 0.0
    %431 = vmatpush1.msra.mxu0 0.0
    %432 = vmatprep.subr.mxu0 0.0
    %433 = vmatpush1.msra.mxu0 0.0
    %434 = vmatprep.subr.mxu0 0.0
    %435 = vmatpush1.msra.mxu0 0.0
    %436 = vmatprep.subr.mxu0 0.0
    %437 = vmatpush1.msra.mxu0 0.0
    %438 = vmatprep.subr.mxu0 0.0
    %439 = vmatpush1.msra.mxu0 0.0
    %440 = vmatprep.subr.mxu0 0.0
    %441 = vmatpush1.msra.mxu0 0.0
    %442 = vmatprep.subr.mxu0 0.0
    %443 = vmatpush1.msra.mxu0 0.0
    %444 = vmatprep.subr.mxu0 0.0
    %445 = vmatpush1.msra.mxu0 0.0
    %446 = vmatprep.subr.mxu0 0.0
    %447 = vmatpush1.msra.mxu0 0.0
    %448 = vmatprep.subr.mxu0 0.0
    %449 = vmatpush1.msra.mxu0 0.0
    %450 = vmatprep.subr.mxu0 0.0
    %451 = vmatpush1.msra.mxu0 0.0
    %452 = vmatprep.subr.mxu0 0.0
    %453 = vmatpush1.msra.mxu0 0.0
    %454 = vmatprep.subr.mxu0 0.0
    %455 = vmatpush1.msra.mxu0 0.0
    %456 = vmatprep.subr.mxu0 0.0
    %457 = vmatpush1.msra.mxu0 0.0
    %458 = vmatprep.subr.mxu0 0.0
    %459 = vmatpush1.msra.mxu0 0.0
    %460 = vmatprep.subr.mxu0 0.0
    %461 = vmatpush1.msra.mxu0 0.0
    %462 = vmatprep.subr.mxu0 0.0
    %463 = vmatpush1.msra.mxu0 0.0
    %464 = vmatprep.mubr.f32.mxu0 0.0
    %465 = vmatmul.mubr.f32.gmra.mrb[0].mxu0 %v398
    %v466 = vpop.f32.mrb[0].mxu0
    %v467 = vadd.f32 %v393, %v466
    %v468 = vpop.f32.mrb[0].mxu0
    %v469 = vadd.f32 %v394, %v468
    %470 = vdwg.mxu0
    %v471 = vxor.u32 %v467, 2147483648
    %v472 = vxor.u32 %v469, 2147483648
    %v473 = vmul.f32 %v471, 1.442695
    %v474 = vpow.pop %v473
    %v475 = vmul.f32 %v472, 1.442695
    %v476 = vpow.pop %v475
    %v477 = vadd.f32 %v474, 1.0
    %v478 = vadd.f32 %v476, 1.0
    %v479 = vrcp.pop %v477
    %v480 = vmul.f32 1.0, %v479
    %v481 = vrcp.pop %v478
    %v482 = vmul.f32 1.0, %v481
    %v483 = vtanh.pop %v469
    %485 = vrot.lane.b32.xlu0 %v385, 64
    %v486 = vpop.permute.xlu0 %485
    %v488 = vmul.f32 %v480, %v486
    %v489 = vmul.f32 %v480, %v483
    %491 = vrot.lane.b32.xlu0 %v489, 64
    %v492 = vpop.permute.xlu0 %491
    %v494 = vadd.f32 %v488, %v492
    %v495 = vtanh.pop %v494
    %v496 = vmul.f32 %v482, %v495
    %498 = vrot.lane.b32.xlu0 %v496, 64
    %v499 = vpop.permute.xlu0 %498
    %v500 = vrot.slane %v264, 4
    %v501 = vrot.slane %v266, 4
    %v504 = vsel %vm86, %v499, 0
    %506 = vmatprep.subr.mxu0 %v39
    %507 = vmatpush1.msra.mxu0 %v38
    %508 = vmatprep.subr.mxu0 %v41
    %509 = vmatpush1.msra.mxu0 %v40
    %510 = vmatprep.subr.mxu0 %v43
    %511 = vmatpush1.msra.mxu0 %v42
    %512 = vmatprep.subr.mxu0 %v45
    %513 = vmatpush1.msra.mxu0 %v44
    %514 = vmatprep.subr.mxu0 %v47
    %515 = vmatpush1.msra.mxu0 %v46
    %516 = vmatprep.subr.mxu0 %v49
    %517 = vmatpush1.msra.mxu0 %v48
    %518 = vmatprep.subr.mxu0 %v51
    %519 = vmatpush1.msra.mxu0 %v50
    %520 = vmatprep.subr.mxu0 %v53
    %521 = vmatpush1.msra.mxu0 %v52
    %522 = vmatprep.subr.mxu0 0.0
    %523 = vmatpush1.msra.mxu0 0.0
    %524 = vmatprep.subr.mxu0 0.0
    %525 = vmatpush1.msra.mxu0 0.0
    %526 = vmatprep.subr.mxu0 0.0
    %527 = vmatpush1.msra.mxu0 0.0
    %528 = vmatprep.subr.mxu0 0.0
    %529 = vmatpush1.msra.mxu0 0.0
    %530 = vmatprep.subr.mxu0 0.0
    %531 = vmatpush1.msra.mxu0 0.0
    %532 = vmatprep.subr.mxu0 0.0
    %533 = vmatpush1.msra.mxu0 0.0
    %534 = vmatprep.subr.mxu0 0.0
    %535 = vmatpush1.msra.mxu0 0.0
    %536 = vmatprep.subr.mxu0 0.0
    %537 = vmatpush1.msra.mxu0 0.0
    %538 = vmatprep.subr.mxu0 0.0
    %539 = vmatpush1.msra.mxu0 0.0
    %540 = vmatprep.subr.mxu0 0.0
    %541 = vmatpush1.msra.mxu0 0.0
    %542 = vmatprep.subr.mxu0 0.0
    %543 = vmatpush1.msra.mxu0 0.0
    %544 = vmatprep.subr.mxu0 0.0
    %545 = vmatpush1.msra.mxu0 0.0
    %546 = vmatprep.subr.mxu0 0.0
    %547 = vmatpush1.msra.mxu0 0.0
    %548 = vmatprep.subr.mxu0 0.0
    %549 = vmatpush1.msra.mxu0 0.0
    %550 = vmatprep.subr.mxu0 0.0
    %551 = vmatpush1.msra.mxu0 0.0
    %552 = vmatprep.subr.mxu0 0.0
    %553 = vmatpush1.msra.mxu0 0.0
    %554 = vmatprep.subr.mxu0 0.0
    %555 = vmatpush1.msra.mxu0 0.0
    %556 = vmatprep.subr.mxu0 0.0
    %557 = vmatpush1.msra.mxu0 0.0
    %558 = vmatprep.subr.mxu0 0.0
    %559 = vmatpush1.msra.mxu0 0.0
    %560 = vmatprep.subr.mxu0 0.0
    %561 = vmatpush1.msra.mxu0 0.0
    %562 = vmatprep.subr.mxu0 0.0
    %563 = vmatpush1.msra.mxu0 0.0
    %564 = vmatprep.subr.mxu0 0.0
    %565 = vmatpush1.msra.mxu0 0.0
    %566 = vmatprep.subr.mxu0 0.0
    %567 = vmatpush1.msra.mxu0 0.0
    %568 = vmatprep.subr.mxu0 0.0
    %569 = vmatpush1.msra.mxu0 0.0
    %570 = vmatprep.mubr.f32.mxu0 0.0
    %571 = vmatmul.mubr.f32.gmra.mrb[0].mxu0 %v504
    %v572 = vpop.f32.mrb[0].mxu0
    %v573 = vadd.f32 %v500, %v572
    %v574 = vpop.f32.mrb[0].mxu0
    %v575 = vadd.f32 %v501, %v574
    %576 = vdwg.mxu0
    %v577 = vxor.u32 %v573, 2147483648
    %v578 = vxor.u32 %v575, 2147483648
    %v579 = vmul.f32 %v577, 1.442695
    %v580 = vpow.pop %v579
    %v581 = vmul.f32 %v578, 1.442695
    %v582 = vpow.pop %v581
    %v583 = vadd.f32 %v580, 1.0
    %v584 = vadd.f32 %v582, 1.0
    %v585 = vrcp.pop %v583
    %v586 = vmul.f32 1.0, %v585
    %v587 = vrcp.pop %v584
    %v588 = vmul.f32 1.0, %v587
    %v589 = vtanh.pop %v575
    %v590 = vmul.f32 %v586, %v494
    %v591 = vmul.f32 %v586, %v589
    %593 = vrot.lane.b32.xlu0 %v591, 64
    %v594 = vpop.permute.xlu0 %593
    %v596 = vadd.f32 %v590, %v594
    %v597 = vtanh.pop %v596
    %v598 = vmul.f32 %v588, %v597
    %600 = vrot.lane.b32.xlu0 %v598, 64
    %v601 = vpop.permute.xlu0 %600
    %v602 = vrot.slane %v264, 6
    %v603 = vrot.slane %v266, 6
    %v606 = vsel %vm86, %v601, 0
    %608 = vmatprep.subr.mxu0 %v39
    %609 = vmatpush1.msra.mxu0 %v38
    %610 = vmatprep.subr.mxu0 %v41
    %611 = vmatpush1.msra.mxu0 %v40
    %612 = vmatprep.subr.mxu0 %v43
    %613 = vmatpush1.msra.mxu0 %v42
    %614 = vmatprep.subr.mxu0 %v45
    %615 = vmatpush1.msra.mxu0 %v44
    %616 = vmatprep.subr.mxu0 %v47
    %617 = vmatpush1.msra.mxu0 %v46
    %618 = vmatprep.subr.mxu0 %v49
    %619 = vmatpush1.msra.mxu0 %v48
    %620 = vmatprep.subr.mxu0 %v51
    %621 = vmatpush1.msra.mxu0 %v50
    %622 = vmatprep.subr.mxu0 %v53
    %623 = vmatpush1.msra.mxu0 %v52
    %624 = vmatprep.subr.mxu0 0.0
    %625 = vmatpush1.msra.mxu0 0.0
    %626 = vmatprep.subr.mxu0 0.0
    %627 = vmatpush1.msra.mxu0 0.0
    %628 = vmatprep.subr.mxu0 0.0
    %629 = vmatpush1.msra.mxu0 0.0
    %630 = vmatprep.subr.mxu0 0.0
    %631 = vmatpush1.msra.mxu0 0.0
    %632 = vmatprep.subr.mxu0 0.0
    %633 = vmatpush1.msra.mxu0 0.0
    %634 = vmatprep.subr.mxu0 0.0
    %635 = vmatpush1.msra.mxu0 0.0
    %636 = vmatprep.subr.mxu0 0.0
    %637 = vmatpush1.msra.mxu0 0.0
    %638 = vmatprep.subr.mxu0 0.0
    %639 = vmatpush1.msra.mxu0 0.0
    %640 = vmatprep.subr.mxu0 0.0
    %641 = vmatpush1.msra.mxu0 0.0
    %642 = vmatprep.subr.mxu0 0.0
    %643 = vmatpush1.msra.mxu0 0.0
    %644 = vmatprep.subr.mxu0 0.0
    %645 = vmatpush1.msra.mxu0 0.0
    %646 = vmatprep.subr.mxu0 0.0
    %647 = vmatpush1.msra.mxu0 0.0
    %648 = vmatprep.subr.mxu0 0.0
    %649 = vmatpush1.msra.mxu0 0.0
    %650 = vmatprep.subr.mxu0 0.0
    %651 = vmatpush1.msra.mxu0 0.0
    %652 = vmatprep.subr.mxu0 0.0
    %653 = vmatpush1.msra.mxu0 0.0
    %654 = vmatprep.subr.mxu0 0.0
    %655 = vmatpush1.msra.mxu0 0.0
    %656 = vmatprep.subr.mxu0 0.0
    %657 = vmatpush1.msra.mxu0 0.0
    %658 = vmatprep.subr.mxu0 0.0
    %659 = vmatpush1.msra.mxu0 0.0
    %660 = vmatprep.subr.mxu0 0.0
    %661 = vmatpush1.msra.mxu0 0.0
    %662 = vmatprep.subr.mxu0 0.0
    %663 = vmatpush1.msra.mxu0 0.0
    %664 = vmatprep.subr.mxu0 0.0
    %665 = vmatpush1.msra.mxu0 0.0
    %666 = vmatprep.subr.mxu0 0.0
    %667 = vmatpush1.msra.mxu0 0.0
    %668 = vmatprep.subr.mxu0 0.0
    %669 = vmatpush1.msra.mxu0 0.0
    %670 = vmatprep.subr.mxu0 0.0
    %671 = vmatpush1.msra.mxu0 0.0
    %672 = vmatprep.mubr.f32.mxu0 0.0
    %673 = vmatmul.mubr.f32.gmra.mrb[0].mxu0 %v606
    %v674 = vpop.f32.mrb[0].mxu0
    %v675 = vadd.f32 %v602, %v674
    %v676 = vpop.f32.mrb[0].mxu0
    %v677 = vadd.f32 %v603, %v676
    %678 = vdwg.mxu0
    %v679 = vxor.u32 %v675, 2147483648
    %v680 = vxor.u32 %v677, 2147483648
    %v681 = vmul.f32 %v679, 1.442695
    %v682 = vpow.pop %v681
    %v683 = vmul.f32 %v680, 1.442695
    %v684 = vpow.pop %v683
    %v685 = vadd.f32 %v682, 1.0
    %v686 = vadd.f32 %v684, 1.0
    %v687 = vrcp.pop %v685
    %v688 = vmul.f32 1.0, %v687
    %v689 = vrcp.pop %v686
    %v690 = vmul.f32 1.0, %v689
    %v691 = vtanh.pop %v677
    %v692 = vmul.f32 %v688, %v596
    %v693 = vmul.f32 %v688, %v691
    %695 = vrot.lane.b32.xlu0 %v693, 64
    %v696 = vpop.permute.xlu0 %695
    %v698 = vadd.f32 %v692, %v696
    %v699 = vtanh.pop %v698
    %v700 = vmul.f32 %v690, %v699
    %702 = vrot.lane.b32.xlu0 %v700, 64
    %v703 = vpop.permute.xlu0 %702
    %v704 = vsel %vm86, %v703, 0
    %706 = vmatprep.subr.mxu0 %v39
    %707 = vmatpush1.msra.mxu0 %v38
    %708 = vmatprep.subr.mxu0 %v41
    %709 = vmatpush1.msra.mxu0 %v40
    %710 = vmatprep.subr.mxu0 %v43
    %711 = vmatpush1.msra.mxu0 %v42
    %712 = vmatprep.subr.mxu0 %v45
    %713 = vmatpush1.msra.mxu0 %v44
    %714 = vmatprep.subr.mxu0 %v47
    %715 = vmatpush1.msra.mxu0 %v46
    %716 = vmatprep.subr.mxu0 %v49
    %717 = vmatpush1.msra.mxu0 %v48
    %718 = vmatprep.subr.mxu0 %v51
    %719 = vmatpush1.msra.mxu0 %v50
    %720 = vmatprep.subr.mxu0 %v53
    %721 = vmatpush1.msra.mxu0 %v52
    %722 = vmatprep.subr.mxu0 0.0
    %723 = vmatpush1.msra.mxu0 0.0
    %724 = vmatprep.subr.mxu0 0.0
    %725 = vmatpush1.msra.mxu0 0.0
    %726 = vmatprep.subr.mxu0 0.0
    %727 = vmatpush1.msra.mxu0 0.0
    %728 = vmatprep.subr.mxu0 0.0
    %729 = vmatpush1.msra.mxu0 0.0
    %730 = vmatprep.subr.mxu0 0.0
    %731 = vmatpush1.msra.mxu0 0.0
    %732 = vmatprep.subr.mxu0 0.0
    %733 = vmatpush1.msra.mxu0 0.0
    %734 = vmatprep.subr.mxu0 0.0
    %735 = vmatpush1.msra.mxu0 0.0
    %736 = vmatprep.subr.mxu0 0.0
    %737 = vmatpush1.msra.mxu0 0.0
    %738 = vmatprep.subr.mxu0 0.0
    %739 = vmatpush1.msra.mxu0 0.0
    %740 = vmatprep.subr.mxu0 0.0
    %741 = vmatpush1.msra.mxu0 0.0
    %742 = vmatprep.subr.mxu0 0.0
    %743 = vmatpush1.msra.mxu0 0.0
    %744 = vmatprep.subr.mxu0 0.0
    %745 = vmatpush1.msra.mxu0 0.0
    %746 = vmatprep.subr.mxu0 0.0
    %747 = vmatpush1.msra.mxu0 0.0
    %748 = vmatprep.subr.mxu0 0.0
    %749 = vmatpush1.msra.mxu0 0.0
    %750 = vmatprep.subr.mxu0 0.0
    %751 = vmatpush1.msra.mxu0 0.0
    %752 = vmatprep.subr.mxu0 0.0
    %753 = vmatpush1.msra.mxu0 0.0
    %754 = vmatprep.subr.mxu0 0.0
    %755 = vmatpush1.msra.mxu0 0.0
    %756 = vmatprep.subr.mxu0 0.0
    %757 = vmatpush1.msra.mxu0 0.0
    %758 = vmatprep.subr.mxu0 0.0
    %759 = vmatpush1.msra.mxu0 0.0
    %760 = vmatprep.subr.mxu0 0.0
    %761 = vmatpush1.msra.mxu0 0.0
    %762 = vmatprep.subr.mxu0 0.0
    %763 = vmatpush1.msra.mxu0 0.0
    %764 = vmatprep.subr.mxu0 0.0
    %765 = vmatpush1.msra.mxu0 0.0
    %766 = vmatprep.subr.mxu0 0.0
    %767 = vmatpush1.msra.mxu0 0.0
    %768 = vmatprep.subr.mxu0 0.0
    %769 = vmatpush1.msra.mxu0 0.0
    %770 = vmatprep.mubr.f32.mxu0 0.0
    %771 = vmatmul.mubr.f32.gmra.mrb[0].mxu0 %v704
    %v772 = vpop.f32.mrb[0].mxu0
    %v773 = vadd.f32 %v270, %v772
    %v774 = vpop.f32.mrb[0].mxu0
    %v775 = vadd.f32 %v272, %v774
    %776 = vdwg.mxu0
    %v777 = vxor.u32 %v773, 2147483648
    %v778 = vxor.u32 %v775, 2147483648
    %v779 = vmul.f32 %v777, 1.442695
    %v780 = vpow.pop %v779
    %v781 = vmul.f32 %v778, 1.442695
    %v782 = vpow.pop %v781
    %v783 = vadd.f32 %v780, 1.0
    %v784 = vadd.f32 %v782, 1.0
    %v785 = vrcp.pop %v783
    %v786 = vmul.f32 1.0, %v785
    %v787 = vrcp.pop %v784
    %v788 = vmul.f32 1.0, %v787
    %v789 = vtanh.pop %v775
    %v790 = vmul.f32 %v786, %v698
    %v791 = vmul.f32 %v786, %v789
    %793 = vrot.lane.b32.xlu0 %v791, 64
    %v794 = vpop.permute.xlu0 %793
    %v796 = vadd.f32 %v790, %v794
    %v797 = vtanh.pop %v796
    %v798 = vmul.f32 %v788, %v797
    %800 = vrot.lane.b32.xlu0 %v798, 64
    %v801 = vpop.permute.xlu0 %800
    %v804 = vrot.slane %v270, 2
    %v805 = vrot.slane %v272, 2
    %v808 = vsel %vm86, %v801, 0
    %810 = vmatprep.subr.mxu0 %v39
    %811 = vmatpush1.msra.mxu0 %v38
    %812 = vmatprep.subr.mxu0 %v41
    %813 = vmatpush1.msra.mxu0 %v40
    %814 = vmatprep.subr.mxu0 %v43
    %815 = vmatpush1.msra.mxu0 %v42
    %816 = vmatprep.subr.mxu0 %v45
    %817 = vmatpush1.msra.mxu0 %v44
    %818 = vmatprep.subr.mxu0 %v47
    %819 = vmatpush1.msra.mxu0 %v46
    %820 = vmatprep.subr.mxu0 %v49
    %821 = vmatpush1.msra.mxu0 %v48
    %822 = vmatprep.subr.mxu0 %v51
    %823 = vmatpush1.msra.mxu0 %v50
    %824 = vmatprep.subr.mxu0 %v53
    %825 = vmatpush1.msra.mxu0 %v52
    %826 = vmatprep.subr.mxu0 0.0
    %827 = vmatpush1.msra.mxu0 0.0
    %828 = vmatprep.subr.mxu0 0.0
    %829 = vmatpush1.msra.mxu0 0.0
    %830 = vmatprep.subr.mxu0 0.0
    %831 = vmatpush1.msra.mxu0 0.0
    %832 = vmatprep.subr.mxu0 0.0
    %833 = vmatpush1.msra.mxu0 0.0
    %834 = vmatprep.subr.mxu0 0.0
    %835 = vmatpush1.msra.mxu0 0.0
    %836 = vmatprep.subr.mxu0 0.0
    %837 = vmatpush1.msra.mxu0 0.0
    %838 = vmatprep.subr.mxu0 0.0
    %839 = vmatpush1.msra.mxu0 0.0
    %840 = vmatprep.subr.mxu0 0.0
    %841 = vmatpush1.msra.mxu0 0.0
    %842 = vmatprep.subr.mxu0 0.0
    %843 = vmatpush1.msra.mxu0 0.0
    %844 = vmatprep.subr.mxu0 0.0
    %845 = vmatpush1.msra.mxu0 0.0
    %846 = vmatprep.subr.mxu0 0.0
    %847 = vmatpush1.msra.mxu0 0.0
    %848 = vmatprep.subr.mxu0 0.0
    %849 = vmatpush1.msra.mxu0 0.0
    %850 = vmatprep.subr.mxu0 0.0
    %851 = vmatpush1.msra.mxu0 0.0
    %852 = vmatprep.subr.mxu0 0.0
    %853 = vmatpush1.msra.mxu0 0.0
    %854 = vmatprep.subr.mxu0 0.0
    %855 = vmatpush1.msra.mxu0 0.0
    %856 = vmatprep.subr.mxu0 0.0
    %857 = vmatpush1.msra.mxu0 0.0
    %858 = vmatprep.subr.mxu0 0.0
    %859 = vmatpush1.msra.mxu0 0.0
    %860 = vmatprep.subr.mxu0 0.0
    %861 = vmatpush1.msra.mxu0 0.0
    %862 = vmatprep.subr.mxu0 0.0
    %863 = vmatpush1.msra.mxu0 0.0
    %864 = vmatprep.subr.mxu0 0.0
    %865 = vmatpush1.msra.mxu0 0.0
    %866 = vmatprep.subr.mxu0 0.0
    %867 = vmatpush1.msra.mxu0 0.0
    %868 = vmatprep.subr.mxu0 0.0
    %869 = vmatpush1.msra.mxu0 0.0
    %870 = vmatprep.subr.mxu0 0.0
    %871 = vmatpush1.msra.mxu0 0.0
    %872 = vmatprep.subr.mxu0 0.0
    %873 = vmatpush1.msra.mxu0 0.0
    %874 = vmatprep.mubr.f32.mxu0 0.0
    %875 = vmatmul.mubr.f32.gmra.mrb[0].mxu0 %v808
    %v876 = vpop.f32.mrb[0].mxu0
    %v877 = vadd.f32 %v804, %v876
    %v878 = vpop.f32.mrb[0].mxu0
    %v879 = vadd.f32 %v805, %v878
    %880 = vdwg.mxu0
    %v881 = vxor.u32 %v877, 2147483648
    %v882 = vxor.u32 %v879, 2147483648
    %v883 = vmul.f32 %v881, 1.442695
    %v884 = vpow.pop %v883
    %v885 = vmul.f32 %v882, 1.442695
    %v886 = vpow.pop %v885
    %v887 = vadd.f32 %v884, 1.0
    %v888 = vadd.f32 %v886, 1.0
    %v889 = vrcp.pop %v887
    %v890 = vmul.f32 1.0, %v889
    %v891 = vrcp.pop %v888
    %v892 = vmul.f32 1.0, %v891
    %v893 = vtanh.pop %v879
    %v894 = vmul.f32 %v890, %v796
    %v895 = vmul.f32 %v890, %v893
    %897 = vrot.lane.b32.xlu0 %v895, 64
    %v898 = vpop.permute.xlu0 %897
    %v900 = vadd.f32 %v894, %v898
    %v901 = vtanh.pop %v900
    %v902 = vmul.f32 %v892, %v901
    %904 = vrot.lane.b32.xlu0 %v902, 64
    %v905 = vpop.permute.xlu0 %904
    %v906 = vrot.slane %v270, 4
    %v907 = vrot.slane %v272, 4
    %v910 = vsel %vm86, %v905, 0
    %912 = vmatprep.subr.mxu0 %v39
    %913 = vmatpush1.msra.mxu0 %v38
    %914 = vmatprep.subr.mxu0 %v41
    %915 = vmatpush1.msra.mxu0 %v40
    %916 = vmatprep.subr.mxu0 %v43
    %917 = vmatpush1.msra.mxu0 %v42
    %918 = vmatprep.subr.mxu0 %v45
    %919 = vmatpush1.msra.mxu0 %v44
    %920 = vmatprep.subr.mxu0 %v47
    %921 = vmatpush1.msra.mxu0 %v46
    %922 = vmatprep.subr.mxu0 %v49
    %923 = vmatpush1.msra.mxu0 %v48
    %924 = vmatprep.subr.mxu0 %v51
    %925 = vmatpush1.msra.mxu0 %v50
    %926 = vmatprep.subr.mxu0 %v53
    %927 = vmatpush1.msra.mxu0 %v52
    %928 = vmatprep.subr.mxu0 0.0
    %929 = vmatpush1.msra.mxu0 0.0
    %930 = vmatprep.subr.mxu0 0.0
    %931 = vmatpush1.msra.mxu0 0.0
    %932 = vmatprep.subr.mxu0 0.0
    %933 = vmatpush1.msra.mxu0 0.0
    %934 = vmatprep.subr.mxu0 0.0
    %935 = vmatpush1.msra.mxu0 0.0
    %936 = vmatprep.subr.mxu0 0.0
    %937 = vmatpush1.msra.mxu0 0.0
    %938 = vmatprep.subr.mxu0 0.0
    %939 = vmatpush1.msra.mxu0 0.0
    %940 = vmatprep.subr.mxu0 0.0
    %941 = vmatpush1.msra.mxu0 0.0
    %942 = vmatprep.subr.mxu0 0.0
    %943 = vmatpush1.msra.mxu0 0.0
    %944 = vmatprep.subr.mxu0 0.0
    %945 = vmatpush1.msra.mxu0 0.0
    %946 = vmatprep.subr.mxu0 0.0
    %947 = vmatpush1.msra.mxu0 0.0
    %948 = vmatprep.subr.mxu0 0.0
    %949 = vmatpush1.msra.mxu0 0.0
    %950 = vmatprep.subr.mxu0 0.0
    %951 = vmatpush1.msra.mxu0 0.0
    %952 = vmatprep.subr.mxu0 0.0
    %953 = vmatpush1.msra.mxu0 0.0
    %954 = vmatprep.subr.mxu0 0.0
    %955 = vmatpush1.msra.mxu0 0.0
    %956 = vmatprep.subr.mxu0 0.0
    %957 = vmatpush1.msra.mxu0 0.0
    %958 = vmatprep.subr.mxu0 0.0
    %959 = vmatpush1.msra.mxu0 0.0
    %960 = vmatprep.subr.mxu0 0.0
    %961 = vmatpush1.msra.mxu0 0.0
    %962 = vmatprep.subr.mxu0 0.0
    %963 = vmatpush1.msra.mxu0 0.0
    %964 = vmatprep.subr.mxu0 0.0
    %965 = vmatpush1.msra.mxu0 0.0
    %966 = vmatprep.subr.mxu0 0.0
    %967 = vmatpush1.msra.mxu0 0.0
    %968 = vmatprep.subr.mxu0 0.0
    %969 = vmatpush1.msra.mxu0 0.0
    %970 = vmatprep.subr.mxu0 0.0
    %971 = vmatpush1.msra.mxu0 0.0
    %972 = vmatprep.subr.mxu0 0.0
    %973 = vmatpush1.msra.mxu0 0.0
    %974 = vmatprep.subr.mxu0 0.0
    %975 = vmatpush1.msra.mxu0 0.0
    %976 = vmatprep.mubr.f32.mxu0 0.0
    %977 = vmatmul.mubr.f32.gmra.mrb[0].mxu0 %v910
    %v978 = vpop.f32.mrb[0].mxu0
    %v979 = vadd.f32 %v906, %v978
    %v980 = vpop.f32.mrb[0].mxu0
    %v981 = vadd.f32 %v907, %v980
    %982 = vdwg.mxu0
    %v983 = vxor.u32 %v979, 2147483648
    %v984 = vxor.u32 %v981, 2147483648
    %v985 = vmul.f32 %v983, 1.442695
    %v986 = vpow.pop %v985
    %v987 = vmul.f32 %v984, 1.442695
    %v988 = vpow.pop %v987
    %v989 = vadd.f32 %v986, 1.0
    %v990 = vadd.f32 %v988, 1.0
    %v991 = vrcp.pop %v989
    %v992 = vmul.f32 1.0, %v991
    %v993 = vrcp.pop %v990
    %v994 = vmul.f32 1.0, %v993
    %v995 = vtanh.pop %v981
    %v996 = vmul.f32 %v992, %v900
    %v997 = vmul.f32 %v992, %v995
    %999 = vrot.lane.b32.xlu0 %v997, 64
    %v1000 = vpop.permute.xlu0 %999
    %v1002 = vadd.f32 %v996, %v1000
    %v1003 = vtanh.pop %v1002
    %v1004 = vmul.f32 %v994, %v1003
    %1006 = vrot.lane.b32.xlu0 %v1004, 64
    %v1007 = vpop.permute.xlu0 %1006
    %v1008 = vrot.slane %v270, 6
    %v1009 = vrot.slane %v272, 6
    %v1012 = vsel %vm86, %v1007, 0
    %1014 = vmatprep.subr.mxu0 %v39
    %1015 = vmatpush1.msra.mxu0 %v38
    %1016 = vmatprep.subr.mxu0 %v41
    %1017 = vmatpush1.msra.mxu0 %v40
    %1018 = vmatprep.subr.mxu0 %v43
    %1019 = vmatpush1.msra.mxu0 %v42
    %1020 = vmatprep.subr.mxu0 %v45
    %1021 = vmatpush1.msra.mxu0 %v44
    %1022 = vmatprep.subr.mxu0 %v47
    %1023 = vmatpush1.msra.mxu0 %v46
    %1024 = vmatprep.subr.mxu0 %v49
    %1025 = vmatpush1.msra.mxu0 %v48
    %1026 = vmatprep.subr.mxu0 %v51
    %1027 = vmatpush1.msra.mxu0 %v50
    %1028 = vmatprep.subr.mxu0 %v53
    %1029 = vmatpush1.msra.mxu0 %v52
    %1030 = vmatprep.subr.mxu0 0.0
    %1031 = vmatpush1.msra.mxu0 0.0
    %1032 = vmatprep.subr.mxu0 0.0
    %1033 = vmatpush1.msra.mxu0 0.0
    %1034 = vmatprep.subr.mxu0 0.0
    %1035 = vmatpush1.msra.mxu0 0.0
    %1036 = vmatprep.subr.mxu0 0.0
    %1037 = vmatpush1.msra.mxu0 0.0
    %1038 = vmatprep.subr.mxu0 0.0
    %1039 = vmatpush1.msra.mxu0 0.0
    %1040 = vmatprep.subr.mxu0 0.0
    %1041 = vmatpush1.msra.mxu0 0.0
    %1042 = vmatprep.subr.mxu0 0.0
    %1043 = vmatpush1.msra.mxu0 0.0
    %1044 = vmatprep.subr.mxu0 0.0
    %1045 = vmatpush1.msra.mxu0 0.0
    %1046 = vmatprep.subr.mxu0 0.0
    %1047 = vmatpush1.msra.mxu0 0.0
    %1048 = vmatprep.subr.mxu0 0.0
    %1049 = vmatpush1.msra.mxu0 0.0
    %1050 = vmatprep.subr.mxu0 0.0
    %1051 = vmatpush1.msra.mxu0 0.0
    %1052 = vmatprep.subr.mxu0 0.0
    %1053 = vmatpush1.msra.mxu0 0.0
    %1054 = vmatprep.subr.mxu0 0.0
    %1055 = vmatpush1.msra.mxu0 0.0
    %1056 = vmatprep.subr.mxu0 0.0
    %1057 = vmatpush1.msra.mxu0 0.0
    %1058 = vmatprep.subr.mxu0 0.0
    %1059 = vmatpush1.msra.mxu0 0.0
    %1060 = vmatprep.subr.mxu0 0.0
    %1061 = vmatpush1.msra.mxu0 0.0
    %1062 = vmatprep.subr.mxu0 0.0
    %1063 = vmatpush1.msra.mxu0 0.0
    %1064 = vmatprep.subr.mxu0 0.0
    %1065 = vmatpush1.msra.mxu0 0.0
    %1066 = vmatprep.subr.mxu0 0.0
    %1067 = vmatpush1.msra.mxu0 0.0
    %1068 = vmatprep.subr.mxu0 0.0
    %1069 = vmatpush1.msra.mxu0 0.0
    %1070 = vmatprep.subr.mxu0 0.0
    %1071 = vmatpush1.msra.mxu0 0.0
    %1072 = vmatprep.subr.mxu0 0.0
    %1073 = vmatpush1.msra.mxu0 0.0
    %1074 = vmatprep.subr.mxu0 0.0
    %1075 = vmatpush1.msra.mxu0 0.0
    %1076 = vmatprep.subr.mxu0 0.0
    %1077 = vmatpush1.msra.mxu0 0.0
    %1078 = vmatprep.mubr.f32.mxu0 0.0
    %1079 = vmatmul.mubr.f32.gmra.mrb[0].mxu0 %v1012
    %v1080 = vpop.f32.mrb[0].mxu0
    %v1081 = vadd.f32 %v1008, %v1080
    %v1082 = vpop.f32.mrb[0].mxu0
    %v1083 = vadd.f32 %v1009, %v1082
    %1084 = vdwg.mxu0
    %v1085 = vxor.u32 %v1081, 2147483648
    %v1086 = vxor.u32 %v1083, 2147483648
    %v1087 = vmul.f32 %v1085, 1.442695
    %v1088 = vpow.pop %v1087
    %v1089 = vmul.f32 %v1086, 1.442695
    %v1090 = vpow.pop %v1089
    %v1091 = vadd.f32 %v1088, 1.0
    %v1092 = vadd.f32 %v1090, 1.0
    %v1093 = vrcp.pop %v1091
    %v1094 = vmul.f32 1.0, %v1093
    %v1095 = vrcp.pop %v1092
    %v1096 = vmul.f32 1.0, %v1095
    %v1097 = vtanh.pop %v1083
    %v1098 = vmul.f32 %v1094, %v1002
    %v1099 = vmul.f32 %v1094, %v1097
    %1101 = vrot.lane.b32.xlu0 %v1099, 64
    %v1102 = vpop.permute.xlu0 %1101
    %v1104 = vadd.f32 %v1098, %v1102
    %v1105 = vtanh.pop %v1104
    %v1106 = vmul.f32 %v1096, %v1105
    %1108 = vrot.lane.b32.xlu0 %v1106, 64
    %v1109 = vpop.permute.xlu0 %1108
    %v1110 = vsel %vm86, %v1109, 0
    %1112 = vmatprep.subr.mxu0 %v39
    %1113 = vmatpush1.msra.mxu0 %v38
    %1114 = vmatprep.subr.mxu0 %v41
    %1115 = vmatpush1.msra.mxu0 %v40
    %1116 = vmatprep.subr.mxu0 %v43
    %1117 = vmatpush1.msra.mxu0 %v42
    %1118 = vmatprep.subr.mxu0 %v45
    %1119 = vmatpush1.msra.mxu0 %v44
    %1120 = vmatprep.subr.mxu0 %v47
    %1121 = vmatpush1.msra.mxu0 %v46
    %1122 = vmatprep.subr.mxu0 %v49
    %1123 = vmatpush1.msra.mxu0 %v48
    %1124 = vmatprep.subr.mxu0 %v51
    %1125 = vmatpush1.msra.mxu0 %v50
    %1126 = vmatprep.subr.mxu0 %v53
    %1127 = vmatpush1.msra.mxu0 %v52
    %1128 = vmatprep.subr.mxu0 0.0
    %1129 = vmatpush1.msra.mxu0 0.0
    %1130 = vmatprep.subr.mxu0 0.0
    %1131 = vmatpush1.msra.mxu0 0.0
    %1132 = vmatprep.subr.mxu0 0.0
    %1133 = vmatpush1.msra.mxu0 0.0
    %1134 = vmatprep.subr.mxu0 0.0
    %1135 = vmatpush1.msra.mxu0 0.0
    %1136 = vmatprep.subr.mxu0 0.0
    %1137 = vmatpush1.msra.mxu0 0.0
    %1138 = vmatprep.subr.mxu0 0.0
    %1139 = vmatpush1.msra.mxu0 0.0
    %1140 = vmatprep.subr.mxu0 0.0
    %1141 = vmatpush1.msra.mxu0 0.0
    %1142 = vmatprep.subr.mxu0 0.0
    %1143 = vmatpush1.msra.mxu0 0.0
    %1144 = vmatprep.subr.mxu0 0.0
    %1145 = vmatpush1.msra.mxu0 0.0
    %1146 = vmatprep.subr.mxu0 0.0
    %1147 = vmatpush1.msra.mxu0 0.0
    %1148 = vmatprep.subr.mxu0 0.0
    %1149 = vmatpush1.msra.mxu0 0.0
    %1150 = vmatprep.subr.mxu0 0.0
    %1151 = vmatpush1.msra.mxu0 0.0
    %1152 = vmatprep.subr.mxu0 0.0
    %1153 = vmatpush1.msra.mxu0 0.0
    %1154 = vmatprep.subr.mxu0 0.0
    %1155 = vmatpush1.msra.mxu0 0.0
    %1156 = vmatprep.subr.mxu0 0.0
    %1157 = vmatpush1.msra.mxu0 0.0
    %1158 = vmatprep.subr.mxu0 0.0
    %1159 = vmatpush1.msra.mxu0 0.0
    %1160 = vmatprep.subr.mxu0 0.0
    %1161 = vmatpush1.msra.mxu0 0.0
    %1162 = vmatprep.subr.mxu0 0.0
    %1163 = vmatpush1.msra.mxu0 0.0
    %1164 = vmatprep.subr.mxu0 0.0
    %1165 = vmatpush1.msra.mxu0 0.0
    %1166 = vmatprep.subr.mxu0 0.0
    %1167 = vmatpush1.msra.mxu0 0.0
    %1168 = vmatprep.subr.mxu0 0.0
    %1169 = vmatpush1.msra.mxu0 0.0
    %1170 = vmatprep.subr.mxu0 0.0
    %1171 = vmatpush1.msra.mxu0 0.0
    %1172 = vmatprep.subr.mxu0 0.0
    %1173 = vmatpush1.msra.mxu0 0.0
    %1174 = vmatprep.subr.mxu0 0.0
    %1175 = vmatpush1.msra.mxu0 0.0
    %1176 = vmatprep.mubr.f32.mxu0 0.0
    %1177 = vmatmul.mubr.f32.gmra.mrb[0].mxu0 %v1110
    %v1178 = vpop.f32.mrb[0].mxu0
    %v1179 = vadd.f32 %v276, %v1178
    %v1180 = vpop.f32.mrb[0].mxu0
    %v1181 = vadd.f32 %v278, %v1180
    %1182 = vdwg.mxu0
    %v1183 = vxor.u32 %v1179, 2147483648
    %v1184 = vxor.u32 %v1181, 2147483648
    %v1185 = vmul.f32 %v1183, 1.442695
    %v1186 = vpow.pop %v1185
    %v1187 = vmul.f32 %v1184, 1.442695
    %v1188 = vpow.pop %v1187
    %v1189 = vadd.f32 %v1186, 1.0
    %v1190 = vadd.f32 %v1188, 1.0
    %v1191 = vrcp.pop %v1189
    %v1192 = vmul.f32 1.0, %v1191
    %v1193 = vrcp.pop %v1190
    %v1194 = vmul.f32 1.0, %v1193
    %v1195 = vtanh.pop %v1181
    %v1196 = vmul.f32 %v1192, %v1104
    %v1197 = vmul.f32 %v1192, %v1195
    %1199 = vrot.lane.b32.xlu0 %v1197, 64
    %v1200 = vpop.permute.xlu0 %1199
    %v1202 = vadd.f32 %v1196, %v1200
    %v1203 = vtanh.pop %v1202
    %v1204 = vmul.f32 %v1194, %v1203
    %1206 = vrot.lane.b32.xlu0 %v54, 96
    %v1207 = vpop.permute.xlu0 %1206
    %v1209 = vmul.f32 %v1204, %v1207
    %1211 = vrot.lane.b32.xlu0 %v1209, 32
    %v1212 = vpop.permute.xlu0 %1211
    %vm1214 = vcmask 254976
    %v1215 = vsel %vm1214, %v1212, 0.0
    %1216 = vadd.xlane.f32.xlu0 %v1215
    %v1217 = vpop.xlane.xlu0 %1216
    %v1218 = vadd.f32 %v1217, %v54
    %v1219 = vxor.u32 %v1218, 2147483648
    %v1220 = vmul.f32 %v1219, 1.442695
    %v1221 = vpow.pop %v1220
    %v1222 = vadd.f32 %v1221, 1.0
    %v1223 = vrcp.pop %v1222
    %v1224 = vmul.f32 1.0, %v1223
    %1227 = vrot.lane.b32.xlu0 %v1204, 64
    %v1228 = vpop.permute.xlu0 %1227
    %v1230 = vsel %vm187, %v1109, %v1228
    %v1231 = vsel %vm86, %v1230, %v1104
    %vm1232 = vcmask 785408
    %v1233 = vsel %vm1232, %v1231, %v1202
    %1235 = vset.pattern.permute.xlu0 32
    %1236 = vperm.xlu0 %1235, %v1224
    %v1237 = vpop.permute.xlu0 %1236
    %v1238 = vrot.slane %v1237, 6
    %vm1240 = vcmask 1041408
    %v1241 = vsel %vm1240, %v1233, %v1238
    %1242 = vst [vmem:[%s3] sm:$0xf] %v1241
    // Predicated region
    $region18: #{sentiment_lstm_forward.1} parent=1 // pred_check
      _
    $region19: #{sentiment_lstm_forward.1} parent=1 // pred_check_branch
      %1244 = sbr.rel (0) target = $region21
    $region20: #{sentiment_lstm_forward.1} parent=1 // pred_region
      _
    $region21: #{sentiment_lstm_forward.1} parent=1 // pred_fallthru
      _
    // Predicated region
    $region22: #{sentiment_lstm_forward.1} parent=1 // pred_check
      _
    $region23: #{sentiment_lstm_forward.1} parent=1 // pred_check_branch
      %1246 = sbr.rel (0) target = $region25
    $region24: #{sentiment_lstm_forward.1} parent=1 // pred_region
      _
    $region25: #{sentiment_lstm_forward.1} parent=1 // pred_fallthru
      _
    %1247 = vsyncpa [#allocation3], 1

</llo_original>
